<compile_context>
chip_gen: v7x
topology: tpu7x:2x2x1
jax: 0.10.0
libtpu: 0.0.40
codegen_flags: <defaults>
</compile_context>

<pallas_src>
import functools

import jax
import jax.numpy as jnp
from jax import lax
from jax.experimental import pallas as pl
from jax.experimental.pallas import tpu as pltpu


def _pg_kernel(x_ref, w_in_ref, b_in_ref, w_dil_ref, w_fu_ref, b_lyr_ref,
               w_out_ref, b_out_ref, o_ref,
               *, num_layers, seq_len, fold, compute_dtype):
    f32 = jnp.float32
    lanes = fold * seq_len

    x = x_ref[...]                                            # (dim, fold*L), f32

    # Lane position *within* each folded batch element.  The periodic mask keeps
    # the roll-based shifts from leaking across batch boundaries when fold > 1.
    pos = lax.broadcasted_iota(jnp.int32, (1, lanes), 1) % seq_len

    def shift_minus(v, d):
        # r[:, t] = v[:, t - d], zero where (t % L) - d < 0
        if d == 0:
            return v
        if d >= seq_len:
            return jnp.zeros_like(v)
        r = pltpu.roll(v, shift=d, axis=1)
        return jnp.where(pos >= d, r, 0.0)

    def shift_plus(v, d):
        # r[:, t] = v[:, t + d], zero where (t % L) + d >= L
        if d == 0:
            return v
        if d >= seq_len:
            return jnp.zeros_like(v)
        r = pltpu.roll(v, shift=lanes - d, axis=1)            # == roll by -d
        return jnp.where(pos < seq_len - d, r, 0.0)

    def dilated_conv3(f_, w_packed, b_col, d):
        # PyTorch Conv1d(k=3, padding=d, dilation=d) as ONE wide-K MXU matmul:
        # (F, 3F) @ concat([f[t-d], f[t], f[t+d]]) along channels -> (F, lanes).
        z = jnp.concatenate([shift_minus(f_, d), f_, shift_plus(f_, d)],
                            axis=0).astype(compute_dtype)
        return jnp.dot(w_packed, z, preferred_element_type=f32) + b_col

    # conv_1x1_in (dim -> F); bf16 operands, f32 accumulation.
    f = (jnp.dot(w_in_ref[...], x.astype(compute_dtype),
                 preferred_element_type=f32) + b_in_ref[...])

    # Static unroll is fine for small num_layers; for 10+ layers switch to
    # lax.fori_loop (dynamic w_dil_ref[i] indexing) to bound vreg live ranges.
    for i in range(num_layers):
        d1 = 2 ** (num_layers - 1 - i)
        d2 = 2 ** i
        c1 = dilated_conv3(f, w_dil_ref[i, 0], b_lyr_ref[i, 0], d1)
        c2 = dilated_conv3(f, w_dil_ref[i, 1], b_lyr_ref[i, 1], d2)
        # conv_fusion: one (F, 2F) matmul over cat([c1, c2]).
        cat = jnp.concatenate([c1, c2], axis=0).astype(compute_dtype)
        fused = (jnp.dot(w_fu_ref[i], cat, preferred_element_type=f32)
                 + b_lyr_ref[i, 2])
        # TODO(synk): nn.Dropout is identity in eval mode; training dropout would
        # use pltpu.prng_seed / pltpu.stateful_bernoulli.
        f = jnp.maximum(fused, 0.0) + f                       # ReLU + residual (f32)

    out = (jnp.dot(w_out_ref[...], f.astype(compute_dtype),
                   preferred_element_type=f32) + b_out_ref[...])
    o_ref[...] = out.astype(o_ref.dtype)


def _pick_batch_chunk(batch, seq_len, target_lanes=512):
    """How many batch elements to fold onto the lane axis per grid step."""
    divisors = [d for d in range(1, batch + 1) if batch % d == 0]
    # Keep >= 2 parallel grid steps whenever possible (v7x has 2 TensorCores).
    cands = [d for d in divisors if batch // d >= 2] or divisors
    for d in cands:
        if d * seq_len >= target_lanes:
            return d
    return cands[-1]


def prediction_generation(x, params, num_layers, *, mxu_dtype=jnp.bfloat16):
    """x: (N, dim, L) float32.  params in PyTorch Conv1d layouts (see __main__)."""
    N, dim, L = x.shape
    F = params["w_in"].shape[0]
    C_out = params["w_out"].shape[0]

    # ---- one-time host-side weight packing (wide-K, MXU-friendly) ----
    # PyTorch Conv1d weight (out, in, k) -> (out, k*F + in): a single (F, 3F)
    # matmul against concat([f[t-d], f[t], f[t+d]]) reproduces the dilated conv.
    def pack3(w):                                             # (nl, F, F, 3)
        return jnp.transpose(w, (0, 1, 3, 2)).reshape(num_layers, F, 3 * F)

    w_dil = jnp.stack([pack3(params["w_d1"]), pack3(params["w_d2"])],
                      axis=1).astype(mxu_dtype)               # (nl, 2, F, 3F)
    w_fu = params["w_fu"].astype(mxu_dtype)                   # (nl, F, 2F)
    w_in = params["w_in"].astype(mxu_dtype)                   # (F, dim)
    w_out = params["w_out"].astype(mxu_dtype)                 # (C_out, F)
    # Biases stay f32: only MXU operands are narrowed, elementwise math stays f32.
    b_lyr = jnp.stack([params["b_d1"], params["b_d2"], params["b_fu"]],
                      axis=1).reshape(num_layers, 3, F, 1).astype(jnp.float32)
    b_in = params["b_in"].reshape(F, 1).astype(jnp.float32)
    b_out = params["b_out"].reshape(C_out, 1).astype(jnp.float32)

    # ---- fold batch elements onto the lane axis (lane-dense, wide matmuls) ----
    nb = _pick_batch_chunk(N, L)
    g = N // nb
    lanes = nb * L
    x_f = x.reshape(g, nb, dim, L).transpose(0, 2, 1, 3).reshape(g, dim, lanes)

    def resident(shape):
        # Full-array block, same block every grid step -> stays resident in VMEM.
        # NOTE: at production sizes (num_layers~11, F=64, long L) also pass
        # pipeline_mode=pl.Buffered(1) so constant blocks are not double-buffered
        # (v7x has only 64 MiB VMEM), and tile L with a receptive-field halo.
        ndim = len(shape)
        return pl.BlockSpec(shape, lambda i, ndim=ndim: (0,) * ndim)

    weight_args = (w_in, b_in, w_dil, w_fu, b_lyr, w_out, b_out)
    flops = 2 * N * L * (dim * F + num_layers * 8 * F * F + F * C_out)
    bytes_accessed = (int(x.size) * x.dtype.itemsize
                      + N * C_out * L * x.dtype.itemsize
                      + sum(int(a.size) * a.dtype.itemsize for a in weight_args))

    kernel = functools.partial(_pg_kernel, num_layers=num_layers, seq_len=L,
                               fold=nb, compute_dtype=mxu_dtype)

    out_f = pl.pallas_call(
        kernel,
        out_shape=jax.ShapeDtypeStruct((g, C_out, lanes), x.dtype),
        grid_spec=pltpu.PrefetchScalarGridSpec(
            num_scalar_prefetch=0,
            grid=(g,),                                        # batch chunks
            in_specs=[
                pl.BlockSpec((None, dim, lanes), lambda i: (i, 0, 0)),  # x (folded)
                resident((F, dim)),                           # w_in
                resident((F, 1)),                             # b_in
                resident((num_layers, 2, F, 3 * F)),          # packed dilated weights
                resident((num_layers, F, 2 * F)),             # fusion weights
                resident((num_layers, 3, F, 1)),              # per-layer biases
                resident((C_out, F)),                         # w_out
                resident((C_out, 1)),                         # b_out
            ],
            out_specs=pl.BlockSpec((None, C_out, lanes), lambda i: (i, 0, 0)),
        ),
        compiler_params=pltpu.CompilerParams(
            dimension_semantics=("parallel",),                # megacore / v7x 2-TC
            vmem_limit_bytes=64 << 20,                        # explicit VMEM budget
        ),
        cost_estimate=pl.CostEstimate(
            flops=flops, transcendentals=0, bytes_accessed=bytes_accessed),
    )(x_f, *weight_args)

    # Un-fold (pure reshape/transpose): (g, C_out, nb*L) -> (N, C_out, L)
    return out_f.reshape(g, C_out, nb, L).transpose(0, 2, 1, 3).reshape(N, C_out, L)


# ---------------------------------------------------------------------------
# Pure-JAX reference (faithful Conv1d semantics via lax.conv_general_dilated).
# ---------------------------------------------------------------------------
def _conv1d_ref(x, w, b, dilation=1, padding=0):
    y = lax.conv_general_dilated(
        x, w, window_strides=(1,), padding=[(padding, padding)],
        rhs_dilation=(dilation,), dimension_numbers=("NCH", "OIH", "NCH"),
        precision=lax.Precision.HIGHEST)
    return y + b[None, :, None]


def _ref_forward(x, p, num_layers):
    f = _conv1d_ref(x, p["w_in"][:, :, None], p["b_in"])
    for i in range(num_layers):
        d1 = 2 ** (num_layers - 1 - i)
        d2 = 2 ** i
        c1 = _conv1d_ref(f, p["w_d1"][i], p["b_d1"][i], dilation=d1, padding=d1)
        c2 = _conv1d_ref(f, p["w_d2"][i], p["b_d2"][i], dilation=d2, padding=d2)
        cat = jnp.concatenate([c1, c2], axis=1)
        g = _conv1d_ref(cat, p["w_fu"][i][:, :, None], p["b_fu"][i])
        f = jnp.maximum(g, 0.0) + f
    return _conv1d_ref(f, p["w_out"][:, :, None], p["b_out"])


if __name__ == "__main__":
    key = jax.random.PRNGKey(0)
    num_layers, F, dim, C_out = 3, 32, 16, 8   # dilations: (4,2,1) and (1,2,4)
    N, L = 4, 128                              # folds 2 batch elems/step -> grid of 2

    ks = jax.random.split(key, 11)
    params = {
        "w_in":  jax.random.normal(ks[0], (F, dim), jnp.float32) * 0.1,
        "b_in":  jax.random.normal(ks[1], (F,), jnp.float32) * 0.1,
        "w_d1":  jax.random.normal(ks[2], (num_layers, F, F, 3), jnp.float32) * 0.1,
        "b_d1":  jax.random.normal(ks[3], (num_layers, F), jnp.float32) * 0.1,
        "w_d2":  jax.random.normal(ks[4], (num_layers, F, F, 3), jnp.float32) * 0.1,
        "b_d2":  jax.random.normal(ks[5], (num_layers, F), jnp.float32) * 0.1,
        "w_fu":  jax.random.normal(ks[6], (num_layers, F, 2 * F), jnp.float32) * 0.1,
        "b_fu":  jax.random.normal(ks[7], (num_layers, F), jnp.float32) * 0.1,
        "w_out": jax.random.normal(ks[8], (C_out, F), jnp.float32) * 0.1,
        "b_out": jax.random.normal(ks[9], (C_out,), jnp.float32) * 0.1,
    }
    x = jax.random.normal(ks[10], (N, dim, L), jnp.float32)

    ref = _ref_forward(x, params, num_layers)

    # Strict semantic check: f32 MXU operands must match the conv reference tightly
    # (validates tap packing, periodic masks and batch folding exactly).
    out32 = jax.block_until_ready(
        prediction_generation(x, params, num_layers, mxu_dtype=jnp.float32))
    assert out32.shape == (N, C_out, L)
    err32 = float(jnp.max(jnp.abs(out32 - ref)))
    assert jnp.allclose(out32, ref, atol=1e-3, rtol=1e-3), err32

    # Production path: bf16 MXU operands with f32 accumulation (looser tolerance).
    outbf = jax.block_until_ready(
        prediction_generation(x, params, num_layers, mxu_dtype=jnp.bfloat16))
    errbf = float(jnp.max(jnp.abs(outbf - ref)))
    assert jnp.allclose(outbf, ref, atol=5e-2, rtol=5e-2), errbf

    print("KERNEL_OK")
</pallas_src>

<mosaic_0001>
module attributes {stable_mosaic.version = 11 : i64} {
  func.func @_pg_kernel(%arg0: i32, %arg1: memref<1x16x256xf32, #tpu.memory_space<vmem>>, %arg2: memref<32x16xf32, #tpu.memory_space<vmem>>, %arg3: memref<32x1xf32, #tpu.memory_space<vmem>>, %arg4: memref<3x2x32x96xf32, #tpu.memory_space<vmem>>, %arg5: memref<3x32x64xf32, #tpu.memory_space<vmem>>, %arg6: memref<3x3x32x1xf32, #tpu.memory_space<vmem>>, %arg7: memref<8x32xf32, #tpu.memory_space<vmem>>, %arg8: memref<8x1xf32, #tpu.memory_space<vmem>>, %arg9: memref<1x8x256xf32, #tpu.memory_space<vmem>>) attributes {dimension_semantics = [#tpu.dimension_semantics<parallel>], iteration_bounds = array<i64: 2>, scalar_prefetch = 0 : i64, scratch_operands = 0 : i64, tpu.core_type = #tpu.core_type<tc>, window_params = [{transform_indices = @transform_0, window_bounds = array<i64: 1, 16, 256>}, {pipeline_mode = #tpu.pipeline_mode<synchronous>, transform_indices = @transform_1, window_bounds = array<i64: 32, 16>}, {pipeline_mode = #tpu.pipeline_mode<synchronous>, transform_indices = @transform_2, window_bounds = array<i64: 32, 1>}, {pipeline_mode = #tpu.pipeline_mode<synchronous>, transform_indices = @transform_3, window_bounds = array<i64: 3, 2, 32, 96>}, {pipeline_mode = #tpu.pipeline_mode<synchronous>, transform_indices = @transform_4, window_bounds = array<i64: 3, 32, 64>}, {pipeline_mode = #tpu.pipeline_mode<synchronous>, transform_indices = @transform_5, window_bounds = array<i64: 3, 3, 32, 1>}, {pipeline_mode = #tpu.pipeline_mode<synchronous>, transform_indices = @transform_6, window_bounds = array<i64: 8, 32>}, {pipeline_mode = #tpu.pipeline_mode<synchronous>, transform_indices = @transform_7, window_bounds = array<i64: 8, 1>}, {transform_indices = @transform_8, window_bounds = array<i64: 1, 8, 256>}]} {
    %c0 = arith.constant 0 : index
    %c0_0 = arith.constant 0 : index
    %c0_1 = arith.constant 0 : index
    %0 = vector.load %arg1[%c0, %c0_0, %c0_1] : memref<1x16x256xf32, #tpu.memory_space<vmem>>, vector<1x16x256xf32>
    %1 = vector.shape_cast %0 : vector<1x16x256xf32> to vector<16x256xf32>
    %2 = tpu.iota {dimensions = array<i32: 1>} : vector<1x256xi32>
    %c128_i32 = arith.constant 128 : i32
    %c0_i32 = arith.constant 0 : i32
    %3 = arith.cmpi eq, %c128_i32, %c0_i32 : i32
    %c1_i32 = arith.constant 1 : i32
    %4 = arith.select %3, %c1_i32, %c128_i32 : i32
    %5 = vector.broadcast %4 : i32 to vector<1x256xi32>
    %6 = arith.remsi %2, %5 : vector<1x256xi32>
    %c0_i32_2 = arith.constant 0 : i32
    %7 = vector.broadcast %c0_i32_2 : i32 to vector<1x256xi32>
    %8 = arith.cmpi ne, %6, %7 : vector<1x256xi32>
    %c0_i32_3 = arith.constant 0 : i32
    %9 = vector.broadcast %c0_i32_3 : i32 to vector<1x256xi32>
    %10 = arith.cmpi slt, %6, %9 : vector<1x256xi32>
    %c0_i32_4 = arith.constant 0 : i32
    %11 = arith.cmpi slt, %4, %c0_i32_4 : i32
    %12 = vector.broadcast %11 : i1 to vector<1x256xi1>
    %13 = vector.broadcast %12 : vector<1x256xi1> to vector<1x256xi1>
    %14 = arith.xori %10, %13 : vector<1x256xi1>
    %15 = arith.andi %14, %8 : vector<1x256xi1>
    %16 = vector.broadcast %4 : i32 to vector<1x256xi32>
    %17 = arith.addi %6, %16 : vector<1x256xi32>
    %18 = arith.select %15, %17, %6 : vector<1x256xi1>, vector<1x256xi32>
    %c0_5 = arith.constant 0 : index
    %c0_6 = arith.constant 0 : index
    %19 = vector.load %arg2[%c0_5, %c0_6] : memref<32x16xf32, #tpu.memory_space<vmem>>, vector<32x16xf32>
    %cst = arith.constant dense<0.000000e+00> : vector<32x256xf32>
    %20 = tpu.matmul %19, %1, %cst {dimension_numbers = #tpu.dot_dimension_numbers<[1], [0], [0], [1], [0, 0, 1, 1], [], []>} : vector<32x16xf32>, vector<16x256xf32>, vector<32x256xf32> -> vector<32x256xf32>
    %c0_7 = arith.constant 0 : index
    %c0_8 = arith.constant 0 : index
    %21 = vector.load %arg3[%c0_7, %c0_8] : memref<32x1xf32, #tpu.memory_space<vmem>>, vector<32x1xf32>
    %22 = vector.broadcast %21 : vector<32x1xf32> to vector<32x256xf32>
    %23 = arith.addf %20, %22 : vector<32x256xf32>
    %c0_9 = arith.constant 0 : index
    %c0_10 = arith.constant 0 : index
    %c0_11 = arith.constant 0 : index
    %c0_12 = arith.constant 0 : index
    %24 = vector.load %arg4[%c0_9, %c0_10, %c0_11, %c0_12] : memref<3x2x32x96xf32, #tpu.memory_space<vmem>>, vector<1x1x32x96xf32>
    %25 = vector.shape_cast %24 : vector<1x1x32x96xf32> to vector<32x96xf32>
    %c0_13 = arith.constant 0 : index
    %c0_14 = arith.constant 0 : index
    %c0_15 = arith.constant 0 : index
    %c0_16 = arith.constant 0 : index
    %26 = vector.load %arg6[%c0_13, %c0_14, %c0_15, %c0_16] : memref<3x3x32x1xf32, #tpu.memory_space<vmem>>, vector<1x1x32x1xf32>
    %27 = vector.shape_cast %26 : vector<1x1x32x1xf32> to vector<32x1xf32>
    %c4_i32 = arith.constant 4 : i32
    %28 = tpu.dynamic_rotate %23 by %c4_i32 dim 1 : vector<32x256xf32>, i32 -> vector<32x256xf32>
    %c4_i32_17 = arith.constant 4 : i32
    %29 = vector.broadcast %c4_i32_17 : i32 to vector<1x256xi32>
    %30 = arith.cmpi sge, %18, %29 : vector<1x256xi32>
    %cst_18 = arith.constant 0.000000e+00 : f32
    %31 = vector.shape_cast %30 : vector<1x256xi1> to vector<1x256xi1>
    %32 = vector.broadcast %31 : vector<1x256xi1> to vector<32x256xi1>
    %33 = vector.broadcast %cst_18 : f32 to vector<32x256xf32>
    %34 = arith.select %32, %28, %33 : vector<32x256xi1>, vector<32x256xf32>
    %c252_i32 = arith.constant 252 : i32
    %35 = tpu.dynamic_rotate %23 by %c252_i32 dim 1 : vector<32x256xf32>, i32 -> vector<32x256xf32>
    %c124_i32 = arith.constant 124 : i32
    %36 = vector.broadcast %c124_i32 : i32 to vector<1x256xi32>
    %37 = arith.cmpi slt, %18, %36 : vector<1x256xi32>
    %cst_19 = arith.constant 0.000000e+00 : f32
    %38 = vector.shape_cast %37 : vector<1x256xi1> to vector<1x256xi1>
    %39 = vector.broadcast %38 : vector<1x256xi1> to vector<32x256xi1>
    %40 = vector.broadcast %cst_19 : f32 to vector<32x256xf32>
    %41 = arith.select %39, %35, %40 : vector<32x256xi1>, vector<32x256xf32>
    %42 = tpu.concatenate %34, %23, %41 in 0 : vector<32x256xf32>, vector<32x256xf32>, vector<32x256xf32> -> vector<96x256xf32>
    %cst_20 = arith.constant dense<0.000000e+00> : vector<32x256xf32>
    %43 = tpu.matmul %25, %42, %cst_20 {dimension_numbers = #tpu.dot_dimension_numbers<[1], [0], [0], [1], [0, 0, 1, 1], [], []>} : vector<32x96xf32>, vector<96x256xf32>, vector<32x256xf32> -> vector<32x256xf32>
    %44 = vector.broadcast %27 : vector<32x1xf32> to vector<32x256xf32>
    %45 = arith.addf %43, %44 : vector<32x256xf32>
    %c0_21 = arith.constant 0 : index
    %c1 = arith.constant 1 : index
    %c0_22 = arith.constant 0 : index
    %c0_23 = arith.constant 0 : index
    %46 = vector.load %arg4[%c0_21, %c1, %c0_22, %c0_23] : memref<3x2x32x96xf32, #tpu.memory_space<vmem>>, vector<1x1x32x96xf32>
    %47 = vector.shape_cast %46 : vector<1x1x32x96xf32> to vector<32x96xf32>
    %c0_24 = arith.constant 0 : index
    %c1_25 = arith.constant 1 : index
    %c0_26 = arith.constant 0 : index
    %c0_27 = arith.constant 0 : index
    %48 = vector.load %arg6[%c0_24, %c1_25, %c0_26, %c0_27] : memref<3x3x32x1xf32, #tpu.memory_space<vmem>>, vector<1x1x32x1xf32>
    %49 = vector.shape_cast %48 : vector<1x1x32x1xf32> to vector<32x1xf32>
    %c1_i32_28 = arith.constant 1 : i32
    %50 = tpu.dynamic_rotate %23 by %c1_i32_28 dim 1 : vector<32x256xf32>, i32 -> vector<32x256xf32>
    %c1_i32_29 = arith.constant 1 : i32
    %51 = vector.broadcast %c1_i32_29 : i32 to vector<1x256xi32>
    %52 = arith.cmpi sge, %18, %51 : vector<1x256xi32>
    %cst_30 = arith.constant 0.000000e+00 : f32
    %53 = vector.shape_cast %52 : vector<1x256xi1> to vector<1x256xi1>
    %54 = vector.broadcast %53 : vector<1x256xi1> to vector<32x256xi1>
    %55 = vector.broadcast %cst_30 : f32 to vector<32x256xf32>
    %56 = arith.select %54, %50, %55 : vector<32x256xi1>, vector<32x256xf32>
    %c255_i32 = arith.constant 255 : i32
    %57 = tpu.dynamic_rotate %23 by %c255_i32 dim 1 : vector<32x256xf32>, i32 -> vector<32x256xf32>
    %c127_i32 = arith.constant 127 : i32
    %58 = vector.broadcast %c127_i32 : i32 to vector<1x256xi32>
    %59 = arith.cmpi slt, %18, %58 : vector<1x256xi32>
    %cst_31 = arith.constant 0.000000e+00 : f32
    %60 = vector.shape_cast %59 : vector<1x256xi1> to vector<1x256xi1>
    %61 = vector.broadcast %60 : vector<1x256xi1> to vector<32x256xi1>
    %62 = vector.broadcast %cst_31 : f32 to vector<32x256xf32>
    %63 = arith.select %61, %57, %62 : vector<32x256xi1>, vector<32x256xf32>
    %64 = tpu.concatenate %56, %23, %63 in 0 : vector<32x256xf32>, vector<32x256xf32>, vector<32x256xf32> -> vector<96x256xf32>
    %cst_32 = arith.constant dense<0.000000e+00> : vector<32x256xf32>
    %65 = tpu.matmul %47, %64, %cst_32 {dimension_numbers = #tpu.dot_dimension_numbers<[1], [0], [0], [1], [0, 0, 1, 1], [], []>} : vector<32x96xf32>, vector<96x256xf32>, vector<32x256xf32> -> vector<32x256xf32>
    %66 = vector.broadcast %49 : vector<32x1xf32> to vector<32x256xf32>
    %67 = arith.addf %65, %66 : vector<32x256xf32>
    %68 = tpu.concatenate %45, %67 in 0 : vector<32x256xf32>, vector<32x256xf32> -> vector<64x256xf32>
    %c0_33 = arith.constant 0 : index
    %c0_34 = arith.constant 0 : index
    %c0_35 = arith.constant 0 : index
    %69 = vector.load %arg5[%c0_33, %c0_34, %c0_35] : memref<3x32x64xf32, #tpu.memory_space<vmem>>, vector<1x32x64xf32>
    %70 = vector.shape_cast %69 : vector<1x32x64xf32> to vector<32x64xf32>
    %cst_36 = arith.constant dense<0.000000e+00> : vector<32x256xf32>
    %71 = tpu.matmul %70, %68, %cst_36 {dimension_numbers = #tpu.dot_dimension_numbers<[1], [0], [0], [1], [0, 0, 1, 1], [], []>} : vector<32x64xf32>, vector<64x256xf32>, vector<32x256xf32> -> vector<32x256xf32>
    %c0_37 = arith.constant 0 : index
    %c2 = arith.constant 2 : index
    %c0_38 = arith.constant 0 : index
    %c0_39 = arith.constant 0 : index
    %72 = vector.load %arg6[%c0_37, %c2, %c0_38, %c0_39] : memref<3x3x32x1xf32, #tpu.memory_space<vmem>>, vector<1x1x32x1xf32>
    %73 = vector.shape_cast %72 : vector<1x1x32x1xf32> to vector<32x1xf32>
    %74 = vector.broadcast %73 : vector<32x1xf32> to vector<32x256xf32>
    %75 = arith.addf %71, %74 : vector<32x256xf32>
    %cst_40 = arith.constant 0.000000e+00 : f32
    %76 = vector.broadcast %cst_40 : f32 to vector<32x256xf32>
    %77 = arith.maximumf %75, %76 : vector<32x256xf32>
    %78 = arith.addf %77, %23 : vector<32x256xf32>
    %c1_41 = arith.constant 1 : index
    %c0_42 = arith.constant 0 : index
    %c0_43 = arith.constant 0 : index
    %c0_44 = arith.constant 0 : index
    %79 = vector.load %arg4[%c1_41, %c0_42, %c0_43, %c0_44] : memref<3x2x32x96xf32, #tpu.memory_space<vmem>>, vector<1x1x32x96xf32>
    %80 = vector.shape_cast %79 : vector<1x1x32x96xf32> to vector<32x96xf32>
    %c1_45 = arith.constant 1 : index
    %c0_46 = arith.constant 0 : index
    %c0_47 = arith.constant 0 : index
    %c0_48 = arith.constant 0 : index
    %81 = vector.load %arg6[%c1_45, %c0_46, %c0_47, %c0_48] : memref<3x3x32x1xf32, #tpu.memory_space<vmem>>, vector<1x1x32x1xf32>
    %82 = vector.shape_cast %81 : vector<1x1x32x1xf32> to vector<32x1xf32>
    %c2_i32 = arith.constant 2 : i32
    %83 = tpu.dynamic_rotate %78 by %c2_i32 dim 1 : vector<32x256xf32>, i32 -> vector<32x256xf32>
    %c2_i32_49 = arith.constant 2 : i32
    %84 = vector.broadcast %c2_i32_49 : i32 to vector<1x256xi32>
    %85 = arith.cmpi sge, %18, %84 : vector<1x256xi32>
    %cst_50 = arith.constant 0.000000e+00 : f32
    %86 = vector.shape_cast %85 : vector<1x256xi1> to vector<1x256xi1>
    %87 = vector.broadcast %86 : vector<1x256xi1> to vector<32x256xi1>
    %88 = vector.broadcast %cst_50 : f32 to vector<32x256xf32>
    %89 = arith.select %87, %83, %88 : vector<32x256xi1>, vector<32x256xf32>
    %c254_i32 = arith.constant 254 : i32
    %90 = tpu.dynamic_rotate %78 by %c254_i32 dim 1 : vector<32x256xf32>, i32 -> vector<32x256xf32>
    %c126_i32 = arith.constant 126 : i32
    %91 = vector.broadcast %c126_i32 : i32 to vector<1x256xi32>
    %92 = arith.cmpi slt, %18, %91 : vector<1x256xi32>
    %cst_51 = arith.constant 0.000000e+00 : f32
    %93 = vector.shape_cast %92 : vector<1x256xi1> to vector<1x256xi1>
    %94 = vector.broadcast %93 : vector<1x256xi1> to vector<32x256xi1>
    %95 = vector.broadcast %cst_51 : f32 to vector<32x256xf32>
    %96 = arith.select %94, %90, %95 : vector<32x256xi1>, vector<32x256xf32>
    %97 = tpu.concatenate %89, %78, %96 in 0 : vector<32x256xf32>, vector<32x256xf32>, vector<32x256xf32> -> vector<96x256xf32>
    %cst_52 = arith.constant dense<0.000000e+00> : vector<32x256xf32>
    %98 = tpu.matmul %80, %97, %cst_52 {dimension_numbers = #tpu.dot_dimension_numbers<[1], [0], [0], [1], [0, 0, 1, 1], [], []>} : vector<32x96xf32>, vector<96x256xf32>, vector<32x256xf32> -> vector<32x256xf32>
    %99 = vector.broadcast %82 : vector<32x1xf32> to vector<32x256xf32>
    %100 = arith.addf %98, %99 : vector<32x256xf32>
    %c1_53 = arith.constant 1 : index
    %c1_54 = arith.constant 1 : index
    %c0_55 = arith.constant 0 : index
    %c0_56 = arith.constant 0 : index
    %101 = vector.load %arg4[%c1_53, %c1_54, %c0_55, %c0_56] : memref<3x2x32x96xf32, #tpu.memory_space<vmem>>, vector<1x1x32x96xf32>
    %102 = vector.shape_cast %101 : vector<1x1x32x96xf32> to vector<32x96xf32>
    %c1_57 = arith.constant 1 : index
    %c1_58 = arith.constant 1 : index
    %c0_59 = arith.constant 0 : index
    %c0_60 = arith.constant 0 : index
    %103 = vector.load %arg6[%c1_57, %c1_58, %c0_59, %c0_60] : memref<3x3x32x1xf32, #tpu.memory_space<vmem>>, vector<1x1x32x1xf32>
    %104 = vector.shape_cast %103 : vector<1x1x32x1xf32> to vector<32x1xf32>
    %c2_i32_61 = arith.constant 2 : i32
    %105 = tpu.dynamic_rotate %78 by %c2_i32_61 dim 1 : vector<32x256xf32>, i32 -> vector<32x256xf32>
    %c2_i32_62 = arith.constant 2 : i32
    %106 = vector.broadcast %c2_i32_62 : i32 to vector<1x256xi32>
    %107 = arith.cmpi sge, %18, %106 : vector<1x256xi32>
    %cst_63 = arith.constant 0.000000e+00 : f32
    %108 = vector.shape_cast %107 : vector<1x256xi1> to vector<1x256xi1>
    %109 = vector.broadcast %108 : vector<1x256xi1> to vector<32x256xi1>
    %110 = vector.broadcast %cst_63 : f32 to vector<32x256xf32>
    %111 = arith.select %109, %105, %110 : vector<32x256xi1>, vector<32x256xf32>
    %c254_i32_64 = arith.constant 254 : i32
    %112 = tpu.dynamic_rotate %78 by %c254_i32_64 dim 1 : vector<32x256xf32>, i32 -> vector<32x256xf32>
    %c126_i32_65 = arith.constant 126 : i32
    %113 = vector.broadcast %c126_i32_65 : i32 to vector<1x256xi32>
    %114 = arith.cmpi slt, %18, %113 : vector<1x256xi32>
    %cst_66 = arith.constant 0.000000e+00 : f32
    %115 = vector.shape_cast %114 : vector<1x256xi1> to vector<1x256xi1>
    %116 = vector.broadcast %115 : vector<1x256xi1> to vector<32x256xi1>
    %117 = vector.broadcast %cst_66 : f32 to vector<32x256xf32>
    %118 = arith.select %116, %112, %117 : vector<32x256xi1>, vector<32x256xf32>
    %119 = tpu.concatenate %111, %78, %118 in 0 : vector<32x256xf32>, vector<32x256xf32>, vector<32x256xf32> -> vector<96x256xf32>
    %cst_67 = arith.constant dense<0.000000e+00> : vector<32x256xf32>
    %120 = tpu.matmul %102, %119, %cst_67 {dimension_numbers = #tpu.dot_dimension_numbers<[1], [0], [0], [1], [0, 0, 1, 1], [], []>} : vector<32x96xf32>, vector<96x256xf32>, vector<32x256xf32> -> vector<32x256xf32>
    %121 = vector.broadcast %104 : vector<32x1xf32> to vector<32x256xf32>
    %122 = arith.addf %120, %121 : vector<32x256xf32>
    %123 = tpu.concatenate %100, %122 in 0 : vector<32x256xf32>, vector<32x256xf32> -> vector<64x256xf32>
    %c1_68 = arith.constant 1 : index
    %c0_69 = arith.constant 0 : index
    %c0_70 = arith.constant 0 : index
    %124 = vector.load %arg5[%c1_68, %c0_69, %c0_70] : memref<3x32x64xf32, #tpu.memory_space<vmem>>, vector<1x32x64xf32>
    %125 = vector.shape_cast %124 : vector<1x32x64xf32> to vector<32x64xf32>
    %cst_71 = arith.constant dense<0.000000e+00> : vector<32x256xf32>
    %126 = tpu.matmul %125, %123, %cst_71 {dimension_numbers = #tpu.dot_dimension_numbers<[1], [0], [0], [1], [0, 0, 1, 1], [], []>} : vector<32x64xf32>, vector<64x256xf32>, vector<32x256xf32> -> vector<32x256xf32>
    %c1_72 = arith.constant 1 : index
    %c2_73 = arith.constant 2 : index
    %c0_74 = arith.constant 0 : index
    %c0_75 = arith.constant 0 : index
    %127 = vector.load %arg6[%c1_72, %c2_73, %c0_74, %c0_75] : memref<3x3x32x1xf32, #tpu.memory_space<vmem>>, vector<1x1x32x1xf32>
    %128 = vector.shape_cast %127 : vector<1x1x32x1xf32> to vector<32x1xf32>
    %129 = vector.broadcast %128 : vector<32x1xf32> to vector<32x256xf32>
    %130 = arith.addf %126, %129 : vector<32x256xf32>
    %cst_76 = arith.constant 0.000000e+00 : f32
    %131 = vector.broadcast %cst_76 : f32 to vector<32x256xf32>
    %132 = arith.maximumf %130, %131 : vector<32x256xf32>
    %133 = arith.addf %132, %78 : vector<32x256xf32>
    %c2_77 = arith.constant 2 : index
    %c0_78 = arith.constant 0 : index
    %c0_79 = arith.constant 0 : index
    %c0_80 = arith.constant 0 : index
    %134 = vector.load %arg4[%c2_77, %c0_78, %c0_79, %c0_80] : memref<3x2x32x96xf32, #tpu.memory_space<vmem>>, vector<1x1x32x96xf32>
    %135 = vector.shape_cast %134 : vector<1x1x32x96xf32> to vector<32x96xf32>
    %c2_81 = arith.constant 2 : index
    %c0_82 = arith.constant 0 : index
    %c0_83 = arith.constant 0 : index
    %c0_84 = arith.constant 0 : index
    %136 = vector.load %arg6[%c2_81, %c0_82, %c0_83, %c0_84] : memref<3x3x32x1xf32, #tpu.memory_space<vmem>>, vector<1x1x32x1xf32>
    %137 = vector.shape_cast %136 : vector<1x1x32x1xf32> to vector<32x1xf32>
    %c1_i32_85 = arith.constant 1 : i32
    %138 = tpu.dynamic_rotate %133 by %c1_i32_85 dim 1 : vector<32x256xf32>, i32 -> vector<32x256xf32>
    %c1_i32_86 = arith.constant 1 : i32
    %139 = vector.broadcast %c1_i32_86 : i32 to vector<1x256xi32>
    %140 = arith.cmpi sge, %18, %139 : vector<1x256xi32>
    %cst_87 = arith.constant 0.000000e+00 : f32
    %141 = vector.shape_cast %140 : vector<1x256xi1> to vector<1x256xi1>
    %142 = vector.broadcast %141 : vector<1x256xi1> to vector<32x256xi1>
    %143 = vector.broadcast %cst_87 : f32 to vector<32x256xf32>
    %144 = arith.select %142, %138, %143 : vector<32x256xi1>, vector<32x256xf32>
    %c255_i32_88 = arith.constant 255 : i32
    %145 = tpu.dynamic_rotate %133 by %c255_i32_88 dim 1 : vector<32x256xf32>, i32 -> vector<32x256xf32>
    %c127_i32_89 = arith.constant 127 : i32
    %146 = vector.broadcast %c127_i32_89 : i32 to vector<1x256xi32>
    %147 = arith.cmpi slt, %18, %146 : vector<1x256xi32>
    %cst_90 = arith.constant 0.000000e+00 : f32
    %148 = vector.shape_cast %147 : vector<1x256xi1> to vector<1x256xi1>
    %149 = vector.broadcast %148 : vector<1x256xi1> to vector<32x256xi1>
    %150 = vector.broadcast %cst_90 : f32 to vector<32x256xf32>
    %151 = arith.select %149, %145, %150 : vector<32x256xi1>, vector<32x256xf32>
    %152 = tpu.concatenate %144, %133, %151 in 0 : vector<32x256xf32>, vector<32x256xf32>, vector<32x256xf32> -> vector<96x256xf32>
    %cst_91 = arith.constant dense<0.000000e+00> : vector<32x256xf32>
    %153 = tpu.matmul %135, %152, %cst_91 {dimension_numbers = #tpu.dot_dimension_numbers<[1], [0], [0], [1], [0, 0, 1, 1], [], []>} : vector<32x96xf32>, vector<96x256xf32>, vector<32x256xf32> -> vector<32x256xf32>
    %154 = vector.broadcast %137 : vector<32x1xf32> to vector<32x256xf32>
    %155 = arith.addf %153, %154 : vector<32x256xf32>
    %c2_92 = arith.constant 2 : index
    %c1_93 = arith.constant 1 : index
    %c0_94 = arith.constant 0 : index
    %c0_95 = arith.constant 0 : index
    %156 = vector.load %arg4[%c2_92, %c1_93, %c0_94, %c0_95] : memref<3x2x32x96xf32, #tpu.memory_space<vmem>>, vector<1x1x32x96xf32>
    %157 = vector.shape_cast %156 : vector<1x1x32x96xf32> to vector<32x96xf32>
    %c2_96 = arith.constant 2 : index
    %c1_97 = arith.constant 1 : index
    %c0_98 = arith.constant 0 : index
    %c0_99 = arith.constant 0 : index
    %158 = vector.load %arg6[%c2_96, %c1_97, %c0_98, %c0_99] : memref<3x3x32x1xf32, #tpu.memory_space<vmem>>, vector<1x1x32x1xf32>
    %159 = vector.shape_cast %158 : vector<1x1x32x1xf32> to vector<32x1xf32>
    %c4_i32_100 = arith.constant 4 : i32
    %160 = tpu.dynamic_rotate %133 by %c4_i32_100 dim 1 : vector<32x256xf32>, i32 -> vector<32x256xf32>
    %c4_i32_101 = arith.constant 4 : i32
    %161 = vector.broadcast %c4_i32_101 : i32 to vector<1x256xi32>
    %162 = arith.cmpi sge, %18, %161 : vector<1x256xi32>
    %cst_102 = arith.constant 0.000000e+00 : f32
    %163 = vector.shape_cast %162 : vector<1x256xi1> to vector<1x256xi1>
    %164 = vector.broadcast %163 : vector<1x256xi1> to vector<32x256xi1>
    %165 = vector.broadcast %cst_102 : f32 to vector<32x256xf32>
    %166 = arith.select %164, %160, %165 : vector<32x256xi1>, vector<32x256xf32>
    %c252_i32_103 = arith.constant 252 : i32
    %167 = tpu.dynamic_rotate %133 by %c252_i32_103 dim 1 : vector<32x256xf32>, i32 -> vector<32x256xf32>
    %c124_i32_104 = arith.constant 124 : i32
    %168 = vector.broadcast %c124_i32_104 : i32 to vector<1x256xi32>
    %169 = arith.cmpi slt, %18, %168 : vector<1x256xi32>
    %cst_105 = arith.constant 0.000000e+00 : f32
    %170 = vector.shape_cast %169 : vector<1x256xi1> to vector<1x256xi1>
    %171 = vector.broadcast %170 : vector<1x256xi1> to vector<32x256xi1>
    %172 = vector.broadcast %cst_105 : f32 to vector<32x256xf32>
    %173 = arith.select %171, %167, %172 : vector<32x256xi1>, vector<32x256xf32>
    %174 = tpu.concatenate %166, %133, %173 in 0 : vector<32x256xf32>, vector<32x256xf32>, vector<32x256xf32> -> vector<96x256xf32>
    %cst_106 = arith.constant dense<0.000000e+00> : vector<32x256xf32>
    %175 = tpu.matmul %157, %174, %cst_106 {dimension_numbers = #tpu.dot_dimension_numbers<[1], [0], [0], [1], [0, 0, 1, 1], [], []>} : vector<32x96xf32>, vector<96x256xf32>, vector<32x256xf32> -> vector<32x256xf32>
    %176 = vector.broadcast %159 : vector<32x1xf32> to vector<32x256xf32>
    %177 = arith.addf %175, %176 : vector<32x256xf32>
    %178 = tpu.concatenate %155, %177 in 0 : vector<32x256xf32>, vector<32x256xf32> -> vector<64x256xf32>
    %c2_107 = arith.constant 2 : index
    %c0_108 = arith.constant 0 : index
    %c0_109 = arith.constant 0 : index
    %179 = vector.load %arg5[%c2_107, %c0_108, %c0_109] : memref<3x32x64xf32, #tpu.memory_space<vmem>>, vector<1x32x64xf32>
    %180 = vector.shape_cast %179 : vector<1x32x64xf32> to vector<32x64xf32>
    %cst_110 = arith.constant dense<0.000000e+00> : vector<32x256xf32>
    %181 = tpu.matmul %180, %178, %cst_110 {dimension_numbers = #tpu.dot_dimension_numbers<[1], [0], [0], [1], [0, 0, 1, 1], [], []>} : vector<32x64xf32>, vector<64x256xf32>, vector<32x256xf32> -> vector<32x256xf32>
    %c2_111 = arith.constant 2 : index
    %c2_112 = arith.constant 2 : index
    %c0_113 = arith.constant 0 : index
    %c0_114 = arith.constant 0 : index
    %182 = vector.load %arg6[%c2_111, %c2_112, %c0_113, %c0_114] : memref<3x3x32x1xf32, #tpu.memory_space<vmem>>, vector<1x1x32x1xf32>
    %183 = vector.shape_cast %182 : vector<1x1x32x1xf32> to vector<32x1xf32>
    %184 = vector.broadcast %183 : vector<32x1xf32> to vector<32x256xf32>
    %185 = arith.addf %181, %184 : vector<32x256xf32>
    %cst_115 = arith.constant 0.000000e+00 : f32
    %186 = vector.broadcast %cst_115 : f32 to vector<32x256xf32>
    %187 = arith.maximumf %185, %186 : vector<32x256xf32>
    %188 = arith.addf %187, %133 : vector<32x256xf32>
    %c0_116 = arith.constant 0 : index
    %c0_117 = arith.constant 0 : index
    %189 = vector.load %arg7[%c0_116, %c0_117] : memref<8x32xf32, #tpu.memory_space<vmem>>, vector<8x32xf32>
    %cst_118 = arith.constant dense<0.000000e+00> : vector<8x256xf32>
    %190 = tpu.matmul %189, %188, %cst_118 {dimension_numbers = #tpu.dot_dimension_numbers<[1], [0], [0], [1], [0, 0, 1, 1], [], []>} : vector<8x32xf32>, vector<32x256xf32>, vector<8x256xf32> -> vector<8x256xf32>
    %c0_119 = arith.constant 0 : index
    %c0_120 = arith.constant 0 : index
    %191 = vector.load %arg8[%c0_119, %c0_120] : memref<8x1xf32, #tpu.memory_space<vmem>>, vector<8x1xf32>
    %192 = vector.broadcast %191 : vector<8x1xf32> to vector<8x256xf32>
    %193 = arith.addf %190, %192 : vector<8x256xf32>
    %c0_121 = arith.constant 0 : index
    %c0_122 = arith.constant 0 : index
    %c0_123 = arith.constant 0 : index
    %194 = vector.load %arg9[%c0_121, %c0_122, %c0_123] : memref<1x8x256xf32, #tpu.memory_space<vmem>>, vector<1x8x256xf32>
    %195 = vector.shape_cast %194 : vector<1x8x256xf32> to vector<8x256xf32>
    %196 = vector.shape_cast %193 : vector<8x256xf32> to vector<1x8x256xf32>
    tpu.vector_store %arg9[%c0_121, %c0_122, %c0_123], %196 {strides = array<i32>} : memref<1x8x256xf32, #tpu.memory_space<vmem>>, vector<1x8x256xf32>,
    return
  }
  func.func @transform_0(%arg0: i32) -> (i32, i32, i32) {
    %c0_i32 = arith.constant 0 : i32
    %c0_i32_0 = arith.constant 0 : i32
    %c0_i32_1 = arith.constant 0 : i32
    return %arg0, %c0_i32, %c0_i32_0 : i32, i32, i32
  }
  func.func @transform_1(%arg0: i32) -> (i32, i32) {
    %c0_i32 = arith.constant 0 : i32
    %c0_i32_0 = arith.constant 0 : i32
    %c0_i32_1 = arith.constant 0 : i32
    return %c0_i32, %c0_i32_0 : i32, i32
  }
  func.func @transform_2(%arg0: i32) -> (i32, i32) {
    %c0_i32 = arith.constant 0 : i32
    %c0_i32_0 = arith.constant 0 : i32
    %c0_i32_1 = arith.constant 0 : i32
    return %c0_i32, %c0_i32_0 : i32, i32
  }
  func.func @transform_3(%arg0: i32) -> (i32, i32, i32, i32) {
    %c0_i32 = arith.constant 0 : i32
    %c0_i32_0 = arith.constant 0 : i32
    %c0_i32_1 = arith.constant 0 : i32
    %c0_i32_2 = arith.constant 0 : i32
    %c0_i32_3 = arith.constant 0 : i32
    return %c0_i32, %c0_i32_0, %c0_i32_1, %c0_i32_2 : i32, i32, i32, i32
  }
  func.func @transform_4(%arg0: i32) -> (i32, i32, i32) {
    %c0_i32 = arith.constant 0 : i32
    %c0_i32_0 = arith.constant 0 : i32
    %c0_i32_1 = arith.constant 0 : i32
    %c0_i32_2 = arith.constant 0 : i32
    return %c0_i32, %c0_i32_0, %c0_i32_1 : i32, i32, i32
  }
  func.func @transform_5(%arg0: i32) -> (i32, i32, i32, i32) {
    %c0_i32 = arith.constant 0 : i32
    %c0_i32_0 = arith.constant 0 : i32
    %c0_i32_1 = arith.constant 0 : i32
    %c0_i32_2 = arith.constant 0 : i32
    %c0_i32_3 = arith.constant 0 : i32
    return %c0_i32, %c0_i32_0, %c0_i32_1, %c0_i32_2 : i32, i32, i32, i32
  }
  func.func @transform_6(%arg0: i32) -> (i32, i32) {
    %c0_i32 = arith.constant 0 : i32
    %c0_i32_0 = arith.constant 0 : i32
    %c0_i32_1 = arith.constant 0 : i32
    return %c0_i32, %c0_i32_0 : i32, i32
  }
  func.func @transform_7(%arg0: i32) -> (i32, i32) {
    %c0_i32 = arith.constant 0 : i32
    %c0_i32_0 = arith.constant 0 : i32
    %c0_i32_1 = arith.constant 0 : i32
    return %c0_i32, %c0_i32_0 : i32, i32
  }
  func.func @transform_8(%arg0: i32) -> (i32, i32, i32) {
    %c0_i32 = arith.constant 0 : i32
    %c0_i32_0 = arith.constant 0 : i32
    %c0_i32_1 = arith.constant 0 : i32
    return %arg0, %c0_i32, %c0_i32_0 : i32, i32, i32
  }
}

</mosaic_0001>

<llo_original>
// kernel: tpu_custom_call.1
$region0: #{tpu_custom_call.1}
  #allocation0 [shape = 'u32[]', space=smem, size = 0x4, offset = 0x4, fixed_abs, tag = 'smem constant byte address 0x4 - core index']
  #allocation1 [shape = 'u32[144,128]{1,0:T(1,128)}', space=vmem, size = 0x12000, scoped, tag = 'internal scratch']
  %s0 = inlined_call_operand.hbm [shape: f32[2,16,256], index: 0, kind: input, shape index: {}]
  %s1 = inlined_call_operand.hbm [shape: f32[32,16], index: 1, kind: input, shape index: {}]
  %s2 = inlined_call_operand.hbm [shape: f32[32,1], index: 2, kind: input, shape index: {}]
  %s3 = inlined_call_operand.hbm [shape: f32[3,2,32,96], index: 3, kind: input, shape index: {}]
  %s4 = inlined_call_operand.hbm [shape: f32[3,32,64], index: 4, kind: input, shape index: {}]
  %s5 = inlined_call_operand.hbm [shape: f32[3,3,32,1], index: 5, kind: input, shape index: {}]
  %s6 = inlined_call_operand.hbm [shape: f32[8,32], index: 6, kind: input, shape index: {}]
  %s7 = inlined_call_operand.hbm [shape: f32[8,1], index: 7, kind: input, shape index: {}]
  %s8 = inlined_call_operand.hbm [shape: f32[2,8,256], index: 8, kind: output, shape index: {}]
  %s9 = sld [smem:[#allocation0]]
  $region97: #{tpu_custom_call.1} parent=0
    _
  %s11 = ssub.s32 1, %s9
  %s12 = scalar_select 0, %s11, %s9
  $region1: #{tpu_custom_call.1} parent=0
    #allocation2 [shape = 'u8[32768]{0}', space=vmem, size = 0x8000, scoped, tag = 'input window, operand 0']
    #allocation3 [shape = 's32[2]{0}', space=sflag, size = 0x8, scoped, tag = 'scoped memory for tpu_custom_call.1']
    #allocation4 [shape = 's32[2]{0}', space=sflag, size = 0x8, scoped, tag = 'scoped memory for tpu_custom_call.1']
    #allocation5 [shape = 'u8[16384]{0}', space=vmem, size = 0x4000, scoped, tag = 'input window, operand 1, single buffered']
    #allocation6 [shape = 's32[1]{0}', space=sflag, size = 0x4, scoped, tag = 'scoped memory for tpu_custom_call.1']
    #allocation7 [shape = 'u8[16384]{0}', space=vmem, size = 0x4000, scoped, tag = 'input window, operand 2, single buffered']
    #allocation8 [shape = 'u8[98304]{0}', space=vmem, size = 0x18000, scoped, tag = 'input window, operand 3, single buffered']
    #allocation9 [shape = 's32[1]{0}', space=sflag, size = 0x4, scoped, tag = 'scoped memory for tpu_custom_call.1']
    #allocation10 [shape = 'u8[49152]{0}', space=vmem, size = 0xc000, scoped, tag = 'input window, operand 4, single buffered']
    #allocation11 [shape = 'u8[147456]{0}', space=vmem, size = 0x24000, scoped, tag = 'input window, operand 5, single buffered']
    #allocation12 [shape = 's32[1]{0}', space=sflag, size = 0x4, scoped, tag = 'scoped memory for tpu_custom_call.1']
    #allocation13 [shape = 'u8[4096]{0}', space=vmem, size = 0x1000, scoped, tag = 'input window, operand 6, single buffered']
    #allocation14 [shape = 'u8[4096]{0}', space=vmem, size = 0x1000, scoped, tag = 'input window, operand 7, single buffered']
    #allocation15 [shape = 's32[1]{0}', space=sflag, size = 0x4, scoped, tag = 'scoped memory for tpu_custom_call.1']
    #allocation16 [shape = 'u8[16384]{0}', space=vmem, size = 0x4000, scoped, tag = 'output window, operand 0']
    %13 = vsyncpa [#allocation3], 0
    %s14 = scalar_lea.sflag [#allocation3], 1
    %15 = vsyncpa %s14, 0
    %16 = vsyncpa [#allocation6], 0
    %17 = vsyncpa [#allocation9], 0
    %18 = vsyncpa [#allocation12], 0
    %19 = vsyncpa [#allocation15], 0
    %20 = vsyncpa [#allocation4], 0
    %s21 = scalar_lea.sflag [#allocation4], 1
    %22 = vsyncpa %s21, 0
    loop: start=0, step=1, limit=4
    $region2: #{tpu_custom_call.1} parent=1 // loop_pre_header
      _
    $region3: #{tpu_custom_call.1} parent=1 // loop_header
      %s24 = sphi 0, %s28
      %p25 = scmp.ge.s32.totalorder %s24, 4
      %s34 = sphi 0, %s36
      %s37 = sphi 0, %s34
      %s38 = sphi 0, %s37
      %s54 = sphi 0, %s38
      %s58 = sphi 0, %s58
      %s60 = sphi 0, %s58
      %s61 = sphi 0, %s60
      %s75 = sphi 0, %s61
      %s79 = sphi 0, %s79
      %s81 = sphi 0, %s79
      %s82 = sphi 0, %s81
      %s96 = sphi 0, %s82
      %s100 = sphi 0, %s100
      %s102 = sphi 0, %s100
      %s103 = sphi 0, %s102
      %s117 = sphi 0, %s103
      %s121 = sphi 0, %s121
      %s123 = sphi 0, %s121
      %s124 = sphi 0, %s123
      %s138 = sphi 0, %s124
      %s142 = sphi 0, %s142
      %s144 = sphi 0, %s142
      %s145 = sphi 0, %s144
      %s159 = sphi 0, %s145
      %s163 = sphi 0, %s163
      %s165 = sphi 0, %s163
      %s166 = sphi 0, %s165
      %s180 = sphi 0, %s166
      %s184 = sphi 0, %s184
      %s186 = sphi 0, %s184
      %s187 = sphi 0, %s186
      %s201 = sphi 0, %s187
      %s207 = sphi 0, %s209
      %s210 = sphi 0, %s207
      %s211 = sphi 0, %s210
      %s227 = sphi 0, %s211
    $region4: #{tpu_custom_call.1} parent=1 // loop_header_branch
      %27 = sbr.rel (%p25) target = $region8
    $region5: #{tpu_custom_call.1} parent=1 // loop_body
      %s29 = ssub.s32 %s24, 1
      %s30 = ssub.s32 %s24, 2
      %s31 = sadd.s32 %s24, 1
      %s32 = ssub.s32 %s24, %s31
      %p33 = scmp.eq.s32.totalorder %s32, 0
      %s35 = sadd.s32 %s34, 1
      %s36 = scalar_select %p33, %s34, %s35
      %p39 = pneg %p33
      %p40 = scmp.eq.s32.totalorder %s24, 1
      %p41 = por %p39, %p40
      %p42 = scmp.ne.s32.totalorder %s34, %s37
      %p43 = scmp.eq.s32.totalorder %s24, 0
      %p44 = por %p42, %p43
      %p45 = scmp.ne.s32.totalorder %s34, %s37
      %p46 = scmp.eq.s32.totalorder %s29, 1
      %p47 = por %p45, %p46
      %p48 = scmp.ne.s32.totalorder %s37, %s38
      %p49 = scmp.eq.s32.totalorder %s29, 0
      %p50 = por %p48, %p49
      %p51 = scmp.ne.s32.totalorder %s37, %s38
      %p52 = scmp.eq.s32.totalorder %s30, 1
      %p53 = por %p51, %p52
      %p55 = scmp.ne.s32.totalorder %s38, %s54
      %p56 = scmp.eq.s32.totalorder %s30, 0
      %p57 = por %p55, %p56
      %s59 = sadd.s32 %s58, 1
      %p62 = scmp.eq.s32.totalorder %s24, 1
      %p63 = scmp.ne.s32.totalorder %s58, %s60
      %p64 = scmp.eq.s32.totalorder %s24, 0
      %p65 = por %p63, %p64
      %p66 = scmp.ne.s32.totalorder %s58, %s60
      %p67 = scmp.eq.s32.totalorder %s29, 1
      %p68 = por %p66, %p67
      %p69 = scmp.ne.s32.totalorder %s60, %s61
      %p70 = scmp.eq.s32.totalorder %s29, 0
      %p71 = por %p69, %p70
      %p72 = scmp.ne.s32.totalorder %s60, %s61
      %p73 = scmp.eq.s32.totalorder %s30, 1
      %p74 = por %p72, %p73
      %p76 = scmp.ne.s32.totalorder %s61, %s75
      %p77 = scmp.eq.s32.totalorder %s30, 0
      %p78 = por %p76, %p77
      %s80 = sadd.s32 %s79, 1
      %p83 = scmp.eq.s32.totalorder %s24, 1
      %p84 = scmp.ne.s32.totalorder %s79, %s81
      %p85 = scmp.eq.s32.totalorder %s24, 0
      %p86 = por %p84, %p85
      %p87 = scmp.ne.s32.totalorder %s79, %s81
      %p88 = scmp.eq.s32.totalorder %s29, 1
      %p89 = por %p87, %p88
      %p90 = scmp.ne.s32.totalorder %s81, %s82
      %p91 = scmp.eq.s32.totalorder %s29, 0
      %p92 = por %p90, %p91
      %p93 = scmp.ne.s32.totalorder %s81, %s82
      %p94 = scmp.eq.s32.totalorder %s30, 1
      %p95 = por %p93, %p94
      %p97 = scmp.ne.s32.totalorder %s82, %s96
      %p98 = scmp.eq.s32.totalorder %s30, 0
      %p99 = por %p97, %p98
      %s101 = sadd.s32 %s100, 1
      %p104 = scmp.eq.s32.totalorder %s24, 1
      %p105 = scmp.ne.s32.totalorder %s100, %s102
      %p106 = scmp.eq.s32.totalorder %s24, 0
      %p107 = por %p105, %p106
      %p108 = scmp.ne.s32.totalorder %s100, %s102
      %p109 = scmp.eq.s32.totalorder %s29, 1
      %p110 = por %p108, %p109
      %p111 = scmp.ne.s32.totalorder %s102, %s103
      %p112 = scmp.eq.s32.totalorder %s29, 0
      %p113 = por %p111, %p112
      %p114 = scmp.ne.s32.totalorder %s102, %s103
      %p115 = scmp.eq.s32.totalorder %s30, 1
      %p116 = por %p114, %p115
      %p118 = scmp.ne.s32.totalorder %s103, %s117
      %p119 = scmp.eq.s32.totalorder %s30, 0
      %p120 = por %p118, %p119
      %s122 = sadd.s32 %s121, 1
      %p125 = scmp.eq.s32.totalorder %s24, 1
      %p126 = scmp.ne.s32.totalorder %s121, %s123
      %p127 = scmp.eq.s32.totalorder %s24, 0
      %p128 = por %p126, %p127
      %p129 = scmp.ne.s32.totalorder %s121, %s123
      %p130 = scmp.eq.s32.totalorder %s29, 1
      %p131 = por %p129, %p130
      %p132 = scmp.ne.s32.totalorder %s123, %s124
      %p133 = scmp.eq.s32.totalorder %s29, 0
      %p134 = por %p132, %p133
      %p135 = scmp.ne.s32.totalorder %s123, %s124
      %p136 = scmp.eq.s32.totalorder %s30, 1
      %p137 = por %p135, %p136
      %p139 = scmp.ne.s32.totalorder %s124, %s138
      %p140 = scmp.eq.s32.totalorder %s30, 0
      %p141 = por %p139, %p140
      %s143 = sadd.s32 %s142, 1
      %p146 = scmp.eq.s32.totalorder %s24, 1
      %p147 = scmp.ne.s32.totalorder %s142, %s144
      %p148 = scmp.eq.s32.totalorder %s24, 0
      %p149 = por %p147, %p148
      %p150 = scmp.ne.s32.totalorder %s142, %s144
      %p151 = scmp.eq.s32.totalorder %s29, 1
      %p152 = por %p150, %p151
      %p153 = scmp.ne.s32.totalorder %s144, %s145
      %p154 = scmp.eq.s32.totalorder %s29, 0
      %p155 = por %p153, %p154
      %p156 = scmp.ne.s32.totalorder %s144, %s145
      %p157 = scmp.eq.s32.totalorder %s30, 1
      %p158 = por %p156, %p157
      %p160 = scmp.ne.s32.totalorder %s145, %s159
      %p161 = scmp.eq.s32.totalorder %s30, 0
      %p162 = por %p160, %p161
      %s164 = sadd.s32 %s163, 1
      %p167 = scmp.eq.s32.totalorder %s24, 1
      %p168 = scmp.ne.s32.totalorder %s163, %s165
      %p169 = scmp.eq.s32.totalorder %s24, 0
      %p170 = por %p168, %p169
      %p171 = scmp.ne.s32.totalorder %s163, %s165
      %p172 = scmp.eq.s32.totalorder %s29, 1
      %p173 = por %p171, %p172
      %p174 = scmp.ne.s32.totalorder %s165, %s166
      %p175 = scmp.eq.s32.totalorder %s29, 0
      %p176 = por %p174, %p175
      %p177 = scmp.ne.s32.totalorder %s165, %s166
      %p178 = scmp.eq.s32.totalorder %s30, 1
      %p179 = por %p177, %p178
      %p181 = scmp.ne.s32.totalorder %s166, %s180
      %p182 = scmp.eq.s32.totalorder %s30, 0
      %p183 = por %p181, %p182
      %s185 = sadd.s32 %s184, 1
      %p188 = scmp.eq.s32.totalorder %s24, 1
      %p189 = scmp.ne.s32.totalorder %s184, %s186
      %p190 = scmp.eq.s32.totalorder %s24, 0
      %p191 = por %p189, %p190
      %p192 = scmp.ne.s32.totalorder %s184, %s186
      %p193 = scmp.eq.s32.totalorder %s29, 1
      %p194 = por %p192, %p193
      %p195 = scmp.ne.s32.totalorder %s186, %s187
      %p196 = scmp.eq.s32.totalorder %s29, 0
      %p197 = por %p195, %p196
      %p198 = scmp.ne.s32.totalorder %s186, %s187
      %p199 = scmp.eq.s32.totalorder %s30, 1
      %p200 = por %p198, %p199
      %p202 = scmp.ne.s32.totalorder %s187, %s201
      %p203 = scmp.eq.s32.totalorder %s30, 0
      %p204 = por %p202, %p203
      %s205 = ssub.s32 %s24, %s31
      %p206 = scmp.eq.s32.totalorder %s205, 0
      %s208 = sadd.s32 %s207, 1
      %s209 = scalar_select %p206, %s207, %s208
      %p212 = pneg %p206
      %p213 = scmp.eq.s32.totalorder %s24, 1
      %p214 = por %p212, %p213
      %p215 = scmp.ne.s32.totalorder %s207, %s210
      %p216 = scmp.eq.s32.totalorder %s24, 0
      %p217 = por %p215, %p216
      %p218 = scmp.ne.s32.totalorder %s207, %s210
      %p219 = scmp.eq.s32.totalorder %s29, 1
      %p220 = por %p218, %p219
      %p221 = scmp.ne.s32.totalorder %s210, %s211
      %p222 = scmp.eq.s32.totalorder %s29, 0
      %p223 = por %p221, %p222
      %p224 = scmp.ne.s32.totalorder %s210, %s211
      %p225 = scmp.eq.s32.totalorder %s30, 1
      %p226 = por %p224, %p225
      %p228 = scmp.ne.s32.totalorder %s211, %s227
      %p229 = scmp.eq.s32.totalorder %s30, 0
      %p230 = por %p228, %p229
      %p231 = scmp.le.s32.totalorder 1, %s24
      %p232 = scmp.lt.s32.totalorder %s24, 3
      %p233 = pnand %p231, %p232
      %p234 = pneg %p233
      // Predicated region
      $region9: #{tpu_custom_call.1} parent=5 // pred_check
        _
      $region10: #{tpu_custom_call.1} parent=5 // pred_check_branch
        %236 = sbr.rel (%p233) target = $region12
      $region11: #{tpu_custom_call.1} parent=5 // pred_region
        %s237 = ssub.s32 %s24, 1
        // Predicated region
        $region13: #{tpu_custom_call.1} parent=11 // pred_check
          %p238 = pneg %p71
        $region14: #{tpu_custom_call.1} parent=11 // pred_check_branch
          %240 = sbr.rel (%p238) target = $region16
        $region15: #{tpu_custom_call.1} parent=11 // pred_region
          %s242 = ssub.s32 512, 512
          %243 = vsyncadd [#allocation6], %s242
          %s244 = sshll.u32 [#allocation5], 4
          %s245 = int_to_ptr.vmem [resolvable:$true] %s244
          %250 = dma.hbm_to_vmem [thread:$0]  %s1, 512, %s245, [#allocation6], 128, 128, 8
        $region16: #{tpu_custom_call.1} parent=11 // pred_fallthru
          _
        // Predicated region
        $region17: #{tpu_custom_call.1} parent=11 // pred_check
          %p251 = pneg %p92
        $region18: #{tpu_custom_call.1} parent=11 // pred_check_branch
          %253 = sbr.rel (%p251) target = $region20
        $region19: #{tpu_custom_call.1} parent=11 // pred_region
          %s255 = ssub.s32 512, 512
          %256 = vsyncadd [#allocation6], %s255
          %s257 = sshll.u32 [#allocation7], 4
          %s258 = int_to_ptr.vmem [resolvable:$true] %s257
          %263 = dma.hbm_to_vmem [thread:$0]  %s2, 512, %s258, [#allocation6], 128, 128, 8
        $region20: #{tpu_custom_call.1} parent=11 // pred_fallthru
          _
        // Predicated region
        $region21: #{tpu_custom_call.1} parent=11 // pred_check
          %p264 = pneg %p113
        $region22: #{tpu_custom_call.1} parent=11 // pred_check_branch
          %266 = sbr.rel (%p264) target = $region24
        $region23: #{tpu_custom_call.1} parent=11 // pred_region
          %s268 = ssub.s32 3072, 3072
          %269 = vsyncadd [#allocation9], %s268
          %s270 = sshll.u32 [#allocation8], 4
          %s271 = int_to_ptr.vmem [resolvable:$true] %s270
          %276 = dma.hbm_to_vmem [thread:$0]  %s3, 3072, %s271, [#allocation9], 128, 128, 8
        $region24: #{tpu_custom_call.1} parent=11 // pred_fallthru
          _
        // Predicated region
        $region25: #{tpu_custom_call.1} parent=11 // pred_check
          %p277 = pneg %p134
        $region26: #{tpu_custom_call.1} parent=11 // pred_check_branch
          %279 = sbr.rel (%p277) target = $region28
        $region27: #{tpu_custom_call.1} parent=11 // pred_region
          %s281 = ssub.s32 1536, 1536
          %282 = vsyncadd [#allocation9], %s281
          %s283 = sshll.u32 [#allocation10], 4
          %s284 = int_to_ptr.vmem [resolvable:$true] %s283
          %289 = dma.hbm_to_vmem [thread:$0]  %s4, 1536, %s284, [#allocation9], 128, 128, 8
        $region28: #{tpu_custom_call.1} parent=11 // pred_fallthru
          _
        // Predicated region
        $region29: #{tpu_custom_call.1} parent=11 // pred_check
          %p290 = pneg %p155
        $region30: #{tpu_custom_call.1} parent=11 // pred_check_branch
          %292 = sbr.rel (%p290) target = $region32
        $region31: #{tpu_custom_call.1} parent=11 // pred_region
          %s294 = ssub.s32 4608, 4608
          %295 = vsyncadd [#allocation12], %s294
          %s296 = sshll.u32 [#allocation11], 4
          %s297 = int_to_ptr.vmem [resolvable:$true] %s296
          %302 = dma.hbm_to_vmem [thread:$0]  %s5, 4608, %s297, [#allocation12], 128, 128, 8
        $region32: #{tpu_custom_call.1} parent=11 // pred_fallthru
          _
        // Predicated region
        $region33: #{tpu_custom_call.1} parent=11 // pred_check
          %p303 = pneg %p176
        $region34: #{tpu_custom_call.1} parent=11 // pred_check_branch
          %305 = sbr.rel (%p303) target = $region36
        $region35: #{tpu_custom_call.1} parent=11 // pred_region
          %s307 = ssub.s32 128, 128
          %308 = vsyncadd [#allocation12], %s307
          %s310 = sshll.u32 [#allocation13], 4
          %s311 = int_to_ptr.vmem [resolvable:$true] %s310
          %313 = dma.hbm_to_vmem [thread:$0]  %s6, 128, %s311, [#allocation12]
        $region36: #{tpu_custom_call.1} parent=11 // pred_fallthru
          _
        // Predicated region
        $region37: #{tpu_custom_call.1} parent=11 // pred_check
          %p314 = pneg %p197
        $region38: #{tpu_custom_call.1} parent=11 // pred_check_branch
          %316 = sbr.rel (%p314) target = $region40
        $region39: #{tpu_custom_call.1} parent=11 // pred_region
          %s318 = ssub.s32 128, 128
          %319 = vsyncadd [#allocation15], %s318
          %s321 = sshll.u32 [#allocation14], 4
          %s322 = int_to_ptr.vmem [resolvable:$true] %s321
          %324 = dma.hbm_to_vmem [thread:$0]  %s7, 128, %s322, [#allocation15]
        $region40: #{tpu_custom_call.1} parent=11 // pred_fallthru
          _
      $region12: #{tpu_custom_call.1} parent=5 // pred_fallthru
        _
      %p325 = scmp.lt.s32.totalorder %s24, 2
      // Predicated region
      $region41: #{tpu_custom_call.1} parent=5 // pred_check
        %p326 = pneg %p325
      $region42: #{tpu_custom_call.1} parent=5 // pred_check_branch
        %328 = sbr.rel (%p326) target = $region44
      $region43: #{tpu_custom_call.1} parent=5 // pred_region
        // Predicated region
        $region45: #{tpu_custom_call.1} parent=43 // pred_check
          %p329 = pneg %p44
        $region46: #{tpu_custom_call.1} parent=43 // pred_check_branch
          %331 = sbr.rel (%p329) target = $region48
        $region47: #{tpu_custom_call.1} parent=43 // pred_region
          %s332 = sand.u32 %s34, 1
          %s333 = scalar_lea.sflag [#allocation3], %s332
          %s334 = sand.u32 %s34, 1
          %s335 = smul.addr %s334, 32
          %s336 = scalar_lea.vmem [#allocation2], %s335
          %s338 = ssub.s32 512, 512
          %339 = vsyncadd %s333, %s338
          %s340 = smul.addr %s24, 4
          %s341 = smul.addr %s340, 128
          %s342 = scalar_lea.hbm %s0, %s341
          %s343 = sshll.u32 %s336, 4
          %s344 = int_to_ptr.vmem [resolvable:$true] %s343
          %349 = dma.hbm_to_vmem [thread:$0]  %s342, 512, %s344, %s333, 256, 256, 16
        $region48: #{tpu_custom_call.1} parent=43 // pred_fallthru
          _
      $region44: #{tpu_custom_call.1} parent=5 // pred_fallthru
        _
      %p350 = scmp.le.s32.totalorder 1, %s24
      %p351 = scmp.lt.s32.totalorder %s24, 3
      %p352 = pnand %p350, %p351
      %p353 = pneg %p352
      // Predicated region
      $region49: #{tpu_custom_call.1} parent=5 // pred_check
        _
      $region50: #{tpu_custom_call.1} parent=5 // pred_check_branch
        %355 = sbr.rel (%p352) target = $region52
      $region51: #{tpu_custom_call.1} parent=5 // pred_region
        %s356 = ssub.s32 %s24, 1
        %s357 = sand.u32 %s37, 1
        %s358 = scalar_lea.sflag [#allocation3], %s357
        %s359 = sand.u32 %s37, 1
        %s360 = smul.addr %s359, 32
        %s361 = scalar_lea.vmem [#allocation2], %s360
        // Predicated region
        $region53: #{tpu_custom_call.1} parent=51 // pred_check
          %p362 = pneg %p50
        $region54: #{tpu_custom_call.1} parent=51 // pred_check_branch
          %364 = sbr.rel (%p362) target = $region56
        $region55: #{tpu_custom_call.1} parent=51 // pred_region
          %365 = dma.done %s358, 512
        $region56: #{tpu_custom_call.1} parent=51 // pred_fallthru
          _
        // Predicated region
        $region57: #{tpu_custom_call.1} parent=51 // pred_check
          %p366 = pneg %p71
        $region58: #{tpu_custom_call.1} parent=51 // pred_check_branch
          %368 = sbr.rel (%p366) target = $region60
        $region59: #{tpu_custom_call.1} parent=51 // pred_region
          %369 = dma.done [#allocation6], 512
        $region60: #{tpu_custom_call.1} parent=51 // pred_fallthru
          _
        // Predicated region
        $region61: #{tpu_custom_call.1} parent=51 // pred_check
          %p370 = pneg %p92
        $region62: #{tpu_custom_call.1} parent=51 // pred_check_branch
          %372 = sbr.rel (%p370) target = $region64
        $region63: #{tpu_custom_call.1} parent=51 // pred_region
          %373 = dma.done [#allocation6], 512
        $region64: #{tpu_custom_call.1} parent=51 // pred_fallthru
          _
        // Predicated region
        $region65: #{tpu_custom_call.1} parent=51 // pred_check
          %p374 = pneg %p113
        $region66: #{tpu_custom_call.1} parent=51 // pred_check_branch
          %376 = sbr.rel (%p374) target = $region68
        $region67: #{tpu_custom_call.1} parent=51 // pred_region
          %377 = dma.done [#allocation9], 3072
        $region68: #{tpu_custom_call.1} parent=51 // pred_fallthru
          _
        // Predicated region
        $region69: #{tpu_custom_call.1} parent=51 // pred_check
          %p378 = pneg %p134
        $region70: #{tpu_custom_call.1} parent=51 // pred_check_branch
          %380 = sbr.rel (%p378) target = $region72
        $region71: #{tpu_custom_call.1} parent=51 // pred_region
          %381 = dma.done [#allocation9], 1536
        $region72: #{tpu_custom_call.1} parent=51 // pred_fallthru
          _
        // Predicated region
        $region73: #{tpu_custom_call.1} parent=51 // pred_check
          %p382 = pneg %p155
        $region74: #{tpu_custom_call.1} parent=51 // pred_check_branch
          %384 = sbr.rel (%p382) target = $region76
        $region75: #{tpu_custom_call.1} parent=51 // pred_region
          %385 = dma.done [#allocation12], 4608
        $region76: #{tpu_custom_call.1} parent=51 // pred_fallthru
          _
        // Predicated region
        $region77: #{tpu_custom_call.1} parent=51 // pred_check
          %p386 = pneg %p176
        $region78: #{tpu_custom_call.1} parent=51 // pred_check_branch
          %388 = sbr.rel (%p386) target = $region80
        $region79: #{tpu_custom_call.1} parent=51 // pred_region
          %389 = dma.done [#allocation12], 128
        $region80: #{tpu_custom_call.1} parent=51 // pred_fallthru
          _
        // Predicated region
        $region81: #{tpu_custom_call.1} parent=51 // pred_check
          %p390 = pneg %p197
        $region82: #{tpu_custom_call.1} parent=51 // pred_check_branch
          %392 = sbr.rel (%p390) target = $region84
        $region83: #{tpu_custom_call.1} parent=51 // pred_region
          %393 = dma.done [#allocation15], 128
        $region84: #{tpu_custom_call.1} parent=51 // pred_fallthru
          _
        %s394 = sand.u32 %s37, 1
        %s395 = scalar_lea.sflag [#allocation3], %s394
        %s396 = sand.u32 %s37, 1
        %s397 = smul.addr %s396, 32
        %s398 = scalar_lea.vmem [#allocation2], %s397
        %p399 = pneg %p50
        %p400 = pneg %p47
        %p401 = pneg %p71
        %p402 = pneg %p68
        %p403 = pneg %p92
        %p404 = pneg %p89
        %p405 = pneg %p113
        %p406 = pneg %p110
        %p407 = pneg %p134
        %p408 = pneg %p131
        %p409 = pneg %p155
        %p410 = pneg %p152
        %p411 = pneg %p176
        %p412 = pneg %p173
        %p413 = pneg %p197
        %p414 = pneg %p194
        %p415 = pneg %p223
        %p416 = pneg %p220
        %s417 = sand.u32 %s210, 1
        %s418 = scalar_lea.sflag [#allocation4], %s417
        %s419 = sand.u32 %s210, 1
        %s420 = smul.addr %s419, 16
        %s421 = scalar_lea.vmem [#allocation16], %s420
        %v422 = vld [vmem:[%s361] sm:$0xff]
        %v423 = vld [vmem:[%s361 + $0x8] sm:$0xff]
        %v424 = vld [vmem:[%s361 + $0x10] sm:$0xff]
        %v425 = vld [vmem:[%s361 + $0x18] sm:$0xff]
        %v426 = vlaneseq
        %v427 = vand.u32 %v426, 127
        %v428 = vadd.s32 %v427, 128
        %vm429 = vcmp.lt.s32.totalorder %v427, 0
        %v430 = vsub.s32 0, %v427
        %v431 = vsel %vm429, %v430, %v427
        %v432 = vshrl.u32 %v431, 7
        %v433 = vand.u32 %v431, 127
        %v434 = vsub.s32 0, %v433
        %v435 = vsel %vm429, %v434, %v433
        %vm436 = vcmp.lt.s32.totalorder %v428, 0
        %v437 = vsub.s32 0, %v428
        %v438 = vsel %vm436, %v437, %v428
        %v439 = vshrl.u32 %v438, 7
        %v440 = vand.u32 %v438, 127
        %v441 = vsub.s32 0, %v440
        %v442 = vsel %vm436, %v441, %v440
        %vm443 = vcmp.ne.s32.totalorder %v435, 0
        %vm444 = vcmp.ne.s32.totalorder %v442, 0
        %vm445 = vcmp.lt.s32.totalorder %v435, 0
        %vm446 = vcmp.lt.s32.totalorder %v442, 0
        %vm447 = vmand %vm445, %vm443
        %vm448 = vmand %vm446, %vm444
        %v449 = vadd.s32 %v435, 128
        %v450 = vadd.s32 %v442, 128
        %v451 = vsel %vm447, %v449, %v435
        %v452 = vsel %vm448, %v450, %v442
        %v453 = vld [vmem:[#allocation5] sm:$0xff]
        %v454 = vld [vmem:[#allocation5 + $0x8] sm:$0xff]
        %v455 = vld [vmem:[#allocation5 + $0x10] sm:$0xff]
        %v456 = vld [vmem:[#allocation5 + $0x18] sm:$0xff]
        %v457 = vld [vmem:[#allocation7] sm:$0xff]
        %v458 = vld [vmem:[#allocation7 + $0x8] sm:$0xff]
        %v459 = vld [vmem:[#allocation7 + $0x10] sm:$0xff]
        %v460 = vld [vmem:[#allocation7 + $0x18] sm:$0xff]
        %462 = vset.pattern.permute.xlu0 0
        %463 = vperm.xlu0 %462, %v457
        %v464 = vpop.permute.xlu0 %463
        %467 = vset.pattern.permute.xlu0 0
        %468 = vperm.xlu0 %467, %v458
        %v469 = vpop.permute.xlu0 %468
        %472 = vset.pattern.permute.xlu0 0
        %473 = vperm.xlu0 %472, %v459
        %v474 = vpop.permute.xlu0 %473
        %477 = vset.pattern.permute.xlu0 0
        %478 = vperm.xlu0 %477, %v460
        %v479 = vpop.permute.xlu0 %478
        %vm481 = vcmask 130048
        %v483 = vsel %vm481, %v453, 0
        %v486 = vsel %vm481, %v454, 0
        %v489 = vsel %vm481, %v455, 0
        %v492 = vsel %vm481, %v456, 0
        %494 = vmatprep.subr.mxu0 %v423
        %495 = vmatpush1.msra.mxu0 %v422
        %496 = vmatprep.subr.mxu0 %v425
        %497 = vmatpush1.msra.mxu0 %v424
        %498 = vmatprep.subr.mxu0 0.0
        %499 = vmatpush1.msra.mxu0 0.0
        %500 = vmatprep.subr.mxu0 0.0
        %501 = vmatpush1.msra.mxu0 0.0
        %502 = vmatprep.subr.mxu0 0.0
        %503 = vmatpush1.msra.mxu0 0.0
        %504 = vmatprep.subr.mxu0 0.0
        %505 = vmatpush1.msra.mxu0 0.0
        %506 = vmatprep.subr.mxu0 0.0
        %507 = vmatpush1.msra.mxu0 0.0
        %508 = vmatprep.subr.mxu0 0.0
        %509 = vmatpush1.msra.mxu0 0.0
        %510 = vmatprep.subr.mxu0 0.0
        %511 = vmatpush1.msra.mxu0 0.0
        %512 = vmatprep.subr.mxu0 0.0
        %513 = vmatpush1.msra.mxu0 0.0
        %514 = vmatprep.subr.mxu0 0.0
        %515 = vmatpush1.msra.mxu0 0.0
        %516 = vmatprep.subr.mxu0 0.0
        %517 = vmatpush1.msra.mxu0 0.0
        %518 = vmatprep.subr.mxu0 0.0
        %519 = vmatpush1.msra.mxu0 0.0
        %520 = vmatprep.subr.mxu0 0.0
        %521 = vmatpush1.msra.mxu0 0.0
        %522 = vmatprep.subr.mxu0 0.0
        %523 = vmatpush1.msra.mxu0 0.0
        %524 = vmatprep.subr.mxu0 0.0
        %525 = vmatpush1.msra.mxu0 0.0
        %526 = vmatprep.subr.mxu0 0.0
        %527 = vmatpush1.msra.mxu0 0.0
        %528 = vmatprep.subr.mxu0 0.0
        %529 = vmatpush1.msra.mxu0 0.0
        %530 = vmatprep.subr.mxu0 0.0
        %531 = vmatpush1.msra.mxu0 0.0
        %532 = vmatprep.subr.mxu0 0.0
        %533 = vmatpush1.msra.mxu0 0.0
        %534 = vmatprep.subr.mxu0 0.0
        %535 = vmatpush1.msra.mxu0 0.0
        %536 = vmatprep.subr.mxu0 0.0
        %537 = vmatpush1.msra.mxu0 0.0
        %538 = vmatprep.subr.mxu0 0.0
        %539 = vmatpush1.msra.mxu0 0.0
        %540 = vmatprep.subr.mxu0 0.0
        %541 = vmatpush1.msra.mxu0 0.0
        %542 = vmatprep.subr.mxu0 0.0
        %543 = vmatpush1.msra.mxu0 0.0
        %544 = vmatprep.subr.mxu0 0.0
        %545 = vmatpush1.msra.mxu0 0.0
        %546 = vmatprep.subr.mxu0 0.0
        %547 = vmatpush1.msra.mxu0 0.0
        %548 = vmatprep.subr.mxu0 0.0
        %549 = vmatpush1.msra.mxu0 0.0
        %550 = vmatprep.subr.mxu0 0.0
        %551 = vmatpush1.msra.mxu0 0.0
        %552 = vmatprep.subr.mxu0 0.0
        %553 = vmatpush1.msra.mxu0 0.0
        %554 = vmatprep.subr.mxu0 0.0
        %555 = vmatpush1.msra.mxu0 0.0
        %556 = vmatprep.subr.mxu0 0.0
        %557 = vmatpush1.msra.mxu0 0.0
        %558 = vmatprep.mubr.f32.mxu0 0.0
        %559 = vmatmul.mubr.f32.gmra.mrb[0].mxu0 %v483
        %v560 = vpop.f32.mrb[0].mxu0
        %v561 = vadd.f32 %v464, %v560
        %v562 = vpop.f32.mrb[0].mxu0
        %v563 = vadd.f32 %v464, %v562
        %564 = vmatprep.mubr.f32.mxu0 0.0
        %565 = vmatmul.mubr.f32.gmra.mrb[0].mxu0 %v486
        %v566 = vpop.f32.mrb[0].mxu0
        %v567 = vadd.f32 %v469, %v566
        %v568 = vpop.f32.mrb[0].mxu0
        %v569 = vadd.f32 %v469, %v568
        %570 = vmatprep.mubr.f32.mxu0 0.0
        %571 = vmatmul.mubr.f32.gmra.mrb[0].mxu0 %v489
        %v572 = vpop.f32.mrb[0].mxu0
        %v573 = vadd.f32 %v474, %v572
        %v574 = vpop.f32.mrb[0].mxu0
        %v575 = vadd.f32 %v474, %v574
        %576 = vmatprep.mubr.f32.mxu0 0.0
        %577 = vmatmul.mubr.f32.gmra.mrb[0].mxu0 %v492
        %v578 = vpop.f32.mrb[0].mxu0
        %v579 = vadd.f32 %v479, %v578
        %v580 = vpop.f32.mrb[0].mxu0
        %v581 = vadd.f32 %v479, %v580
        %582 = vdwg.mxu0
        %v583 = vld [vmem:[#allocation8] sm:$0xff]
        %v584 = vld [vmem:[#allocation8 + $0x8] sm:$0xff]
        %v585 = vld [vmem:[#allocation8 + $0x10] sm:$0xff]
        %v586 = vld [vmem:[#allocation8 + $0x18] sm:$0xff]
        %v587 = vld [vmem:[#allocation11] sm:$0xff]
        %v588 = vld [vmem:[#allocation11 + $0x8] sm:$0xff]
        %v589 = vld [vmem:[#allocation11 + $0x10] sm:$0xff]
        %v590 = vld [vmem:[#allocation11 + $0x18] sm:$0xff]
        %591 = vrot.lane.b32.xlu0 %v561, 4
        %v592 = vpop.permute.xlu0 %591
        %593 = vrot.lane.b32.xlu0 %v567, 4
        %v594 = vpop.permute.xlu0 %593
        %595 = vrot.lane.b32.xlu0 %v573, 4
        %v596 = vpop.permute.xlu0 %595
        %597 = vrot.lane.b32.xlu0 %v579, 4
        %v598 = vpop.permute.xlu0 %597
        %599 = vrot.lane.b32.xlu0 %v563, 4
        %v600 = vpop.permute.xlu0 %599
        %601 = vrot.lane.b32.xlu0 %v569, 4
        %v602 = vpop.permute.xlu0 %601
        %603 = vrot.lane.b32.xlu0 %v575, 4
        %v604 = vpop.permute.xlu0 %603
        %605 = vrot.lane.b32.xlu0 %v581, 4
        %v606 = vpop.permute.xlu0 %605
        %vm607 = vcmp.lt.s32.totalorder %v427, 4
        %v608 = vsel %vm607, %v592, %v600
        %v609 = vsel %vm607, %v594, %v602
        %v610 = vsel %vm607, %v596, %v604
        %v611 = vsel %vm607, %v598, %v606
        %v612 = vsel %vm607, %v600, %v592
        %v613 = vsel %vm607, %v602, %v594
        %v614 = vsel %vm607, %v604, %v596
        %v615 = vsel %vm607, %v606, %v598
        %vm616 = vcmp.ge.s32.totalorder %v451, 4
        %vm617 = vcmp.ge.s32.totalorder %v452, 4
        %v618 = vsel %vm616, 1, 0
        %v619 = vsel %vm617, 1, 0
        %vm620 = vcmp.eq.s32.totalorder %v618, 1
        %vm621 = vcmp.eq.s32.totalorder %v619, 1
        %v622 = vsel %vm620, %v612, 0.0
        %v623 = vsel %vm621, %v608, 0.0
        %v624 = vsel %vm620, %v613, 0.0
        %v625 = vsel %vm621, %v609, 0.0
        %v626 = vsel %vm620, %v614, 0.0
        %v627 = vsel %vm621, %v610, 0.0
        %v628 = vsel %vm620, %v615, 0.0
        %v629 = vsel %vm621, %v611, 0.0
        %630 = vrot.lane.b32.xlu0 %v561, 124
        %v631 = vpop.permute.xlu0 %630
        %632 = vrot.lane.b32.xlu0 %v567, 124
        %v633 = vpop.permute.xlu0 %632
        %634 = vrot.lane.b32.xlu0 %v573, 124
        %v635 = vpop.permute.xlu0 %634
        %636 = vrot.lane.b32.xlu0 %v579, 124
        %v637 = vpop.permute.xlu0 %636
        %638 = vrot.lane.b32.xlu0 %v563, 124
        %v639 = vpop.permute.xlu0 %638
        %640 = vrot.lane.b32.xlu0 %v569, 124
        %v641 = vpop.permute.xlu0 %640
        %642 = vrot.lane.b32.xlu0 %v575, 124
        %v643 = vpop.permute.xlu0 %642
        %644 = vrot.lane.b32.xlu0 %v581, 124
        %v645 = vpop.permute.xlu0 %644
        %vm646 = vcmp.lt.s32.totalorder %v427, 124
        %v647 = vsel %vm646, %v631, %v639
        %v648 = vsel %vm646, %v633, %v641
        %v649 = vsel %vm646, %v635, %v643
        %v650 = vsel %vm646, %v637, %v645
        %v651 = vsel %vm646, %v639, %v631
        %v652 = vsel %vm646, %v641, %v633
        %v653 = vsel %vm646, %v643, %v635
        %v654 = vsel %vm646, %v645, %v637
        %vm655 = vcmp.lt.s32.totalorder %v451, 124
        %vm656 = vcmp.lt.s32.totalorder %v452, 124
        %v657 = vsel %vm655, 1, 0
        %v658 = vsel %vm656, 1, 0
        %vm659 = vcmp.eq.s32.totalorder %v657, 1
        %vm660 = vcmp.eq.s32.totalorder %v658, 1
        %v661 = vsel %vm659, %v647, 0.0
        %v662 = vsel %vm660, %v651, 0.0
        %v663 = vsel %vm659, %v648, 0.0
        %v664 = vsel %vm660, %v652, 0.0
        %v665 = vsel %vm659, %v649, 0.0
        %v666 = vsel %vm660, %v653, 0.0
        %v667 = vsel %vm659, %v650, 0.0
        %v668 = vsel %vm660, %v654, 0.0
        %670 = vset.pattern.permute.xlu0 0
        %671 = vperm.xlu0 %670, %v587
        %v672 = vpop.permute.xlu0 %671
        %675 = vset.pattern.permute.xlu0 0
        %676 = vperm.xlu0 %675, %v588
        %v677 = vpop.permute.xlu0 %676
        %680 = vset.pattern.permute.xlu0 0
        %681 = vperm.xlu0 %680, %v589
        %v682 = vpop.permute.xlu0 %681
        %685 = vset.pattern.permute.xlu0 0
        %686 = vperm.xlu0 %685, %v590
        %v687 = vpop.permute.xlu0 %686
        %vm689 = vcmask 785408
        %v691 = vsel %vm689, %v583, 0
        %v694 = vsel %vm689, %v584, 0
        %v697 = vsel %vm689, %v585, 0
        %v700 = vsel %vm689, %v586, 0
        %702 = vmatprep.subr.mxu0 %v623
        %703 = vmatpush1.msra.mxu0 %v622
        %704 = vmatprep.subr.mxu0 %v625
        %705 = vmatpush1.msra.mxu0 %v624
        %706 = vmatprep.subr.mxu0 %v627
        %707 = vmatpush1.msra.mxu0 %v626
        %708 = vmatprep.subr.mxu0 %v629
        %709 = vmatpush1.msra.mxu0 %v628
        %710 = vmatprep.subr.mxu0 %v563
        %711 = vmatpush1.msra.mxu0 %v561
        %712 = vmatprep.subr.mxu0 %v569
        %713 = vmatpush1.msra.mxu0 %v567
        %714 = vmatprep.subr.mxu0 %v575
        %715 = vmatpush1.msra.mxu0 %v573
        %716 = vmatprep.subr.mxu0 %v581
        %717 = vmatpush1.msra.mxu0 %v579
        %718 = vmatprep.subr.mxu0 %v662
        %719 = vmatpush1.msra.mxu0 %v661
        %720 = vmatprep.subr.mxu0 %v664
        %721 = vmatpush1.msra.mxu0 %v663
        %722 = vmatprep.subr.mxu0 %v666
        %723 = vmatpush1.msra.mxu0 %v665
        %724 = vmatprep.subr.mxu0 %v668
        %725 = vmatpush1.msra.mxu0 %v667
        %726 = vmatprep.subr.mxu0 0.0
        %727 = vmatpush1.msra.mxu0 0.0
        %728 = vmatprep.subr.mxu0 0.0
        %729 = vmatpush1.msra.mxu0 0.0
        %730 = vmatprep.subr.mxu0 0.0
        %731 = vmatpush1.msra.mxu0 0.0
        %732 = vmatprep.subr.mxu0 0.0
        %733 = vmatpush1.msra.mxu0 0.0
        %734 = vmatprep.subr.mxu0 0.0
        %735 = vmatpush1.msra.mxu0 0.0
        %736 = vmatprep.subr.mxu0 0.0
        %737 = vmatpush1.msra.mxu0 0.0
        %738 = vmatprep.subr.mxu0 0.0
        %739 = vmatpush1.msra.mxu0 0.0
        %740 = vmatprep.subr.mxu0 0.0
        %741 = vmatpush1.msra.mxu0 0.0
        %742 = vmatprep.subr.mxu0 0.0
        %743 = vmatpush1.msra.mxu0 0.0
        %744 = vmatprep.subr.mxu0 0.0
        %745 = vmatpush1.msra.mxu0 0.0
        %746 = vmatprep.subr.mxu0 0.0
        %747 = vmatpush1.msra.mxu0 0.0
        %748 = vmatprep.subr.mxu0 0.0
        %749 = vmatpush1.msra.mxu0 0.0
        %750 = vmatprep.subr.mxu0 0.0
        %751 = vmatpush1.msra.mxu0 0.0
        %752 = vmatprep.subr.mxu0 0.0
        %753 = vmatpush1.msra.mxu0 0.0
        %754 = vmatprep.subr.mxu0 0.0
        %755 = vmatpush1.msra.mxu0 0.0
        %756 = vmatprep.subr.mxu0 0.0
        %757 = vmatpush1.msra.mxu0 0.0
        %758 = vmatprep.subr.mxu0 0.0
        %759 = vmatpush1.msra.mxu0 0.0
        %760 = vmatprep.subr.mxu0 0.0
        %761 = vmatpush1.msra.mxu0 0.0
        %762 = vmatprep.subr.mxu0 0.0
        %763 = vmatpush1.msra.mxu0 0.0
        %764 = vmatprep.subr.mxu0 0.0
        %765 = vmatpush1.msra.mxu0 0.0
        %766 = vmatprep.mubr.f32.mxu0 0.0
        %767 = vmatmul.mubr.f32.gmra.mrb[0].mxu0 %v691
        %v768 = vpop.f32.mrb[0].mxu0
        %v769 = vadd.f32 %v672, %v768
        %v770 = vpop.f32.mrb[0].mxu0
        %v771 = vadd.f32 %v672, %v770
        %772 = vmatprep.mubr.f32.mxu0 0.0
        %773 = vmatmul.mubr.f32.gmra.mrb[0].mxu0 %v694
        %v774 = vpop.f32.mrb[0].mxu0
        %v775 = vadd.f32 %v677, %v774
        %v776 = vpop.f32.mrb[0].mxu0
        %v777 = vadd.f32 %v677, %v776
        %778 = vmatprep.mubr.f32.mxu0 0.0
        %779 = vmatmul.mubr.f32.gmra.mrb[0].mxu0 %v697
        %v780 = vpop.f32.mrb[0].mxu0
        %v781 = vadd.f32 %v682, %v780
        %v782 = vpop.f32.mrb[0].mxu0
        %v783 = vadd.f32 %v682, %v782
        %784 = vmatprep.mubr.f32.mxu0 0.0
        %785 = vmatmul.mubr.f32.gmra.mrb[0].mxu0 %v700
        %v786 = vpop.f32.mrb[0].mxu0
        %v787 = vadd.f32 %v687, %v786
        %v788 = vpop.f32.mrb[0].mxu0
        %v789 = vadd.f32 %v687, %v788
        %790 = vdwg.mxu0
        %s791 = scalar_lea.vmem [#allocation8], 32
        %v792 = vld [vmem:[%s791] sm:$0xff]
        %v793 = vld [vmem:[%s791 + $0x8] sm:$0xff]
        %v794 = vld [vmem:[%s791 + $0x10] sm:$0xff]
        %v795 = vld [vmem:[%s791 + $0x18] sm:$0xff]
        %s796 = scalar_lea.vmem [#allocation11], 32
        %v797 = vld [vmem:[%s796] sm:$0xff]
        %v798 = vld [vmem:[%s796 + $0x8] sm:$0xff]
        %v799 = vld [vmem:[%s796 + $0x10] sm:$0xff]
        %v800 = vld [vmem:[%s796 + $0x18] sm:$0xff]
        %801 = vrot.lane.b32.xlu0 %v561, 1
        %v802 = vpop.permute.xlu0 %801
        %803 = vrot.lane.b32.xlu0 %v567, 1
        %v804 = vpop.permute.xlu0 %803
        %805 = vrot.lane.b32.xlu0 %v573, 1
        %v806 = vpop.permute.xlu0 %805
        %807 = vrot.lane.b32.xlu0 %v579, 1
        %v808 = vpop.permute.xlu0 %807
        %809 = vrot.lane.b32.xlu0 %v563, 1
        %v810 = vpop.permute.xlu0 %809
        %811 = vrot.lane.b32.xlu0 %v569, 1
        %v812 = vpop.permute.xlu0 %811
        %813 = vrot.lane.b32.xlu0 %v575, 1
        %v814 = vpop.permute.xlu0 %813
        %815 = vrot.lane.b32.xlu0 %v581, 1
        %v816 = vpop.permute.xlu0 %815
        %vm817 = vcmp.lt.s32.totalorder %v427, 1
        %v818 = vsel %vm817, %v802, %v810
        %v819 = vsel %vm817, %v804, %v812
        %v820 = vsel %vm817, %v806, %v814
        %v821 = vsel %vm817, %v808, %v816
        %v822 = vsel %vm817, %v810, %v802
        %v823 = vsel %vm817, %v812, %v804
        %v824 = vsel %vm817, %v814, %v806
        %v825 = vsel %vm817, %v816, %v808
        %vm826 = vcmp.ge.s32.totalorder %v451, 1
        %vm827 = vcmp.ge.s32.totalorder %v452, 1
        %v828 = vsel %vm826, 1, 0
        %v829 = vsel %vm827, 1, 0
        %vm830 = vcmp.eq.s32.totalorder %v828, 1
        %vm831 = vcmp.eq.s32.totalorder %v829, 1
        %v832 = vsel %vm830, %v822, 0.0
        %v833 = vsel %vm831, %v818, 0.0
        %v834 = vsel %vm830, %v823, 0.0
        %v835 = vsel %vm831, %v819, 0.0
        %v836 = vsel %vm830, %v824, 0.0
        %v837 = vsel %vm831, %v820, 0.0
        %v838 = vsel %vm830, %v825, 0.0
        %v839 = vsel %vm831, %v821, 0.0
        %840 = vrot.lane.b32.xlu0 %v561, 127
        %v841 = vpop.permute.xlu0 %840
        %842 = vrot.lane.b32.xlu0 %v567, 127
        %v843 = vpop.permute.xlu0 %842
        %844 = vrot.lane.b32.xlu0 %v573, 127
        %v845 = vpop.permute.xlu0 %844
        %846 = vrot.lane.b32.xlu0 %v579, 127
        %v847 = vpop.permute.xlu0 %846
        %848 = vrot.lane.b32.xlu0 %v563, 127
        %v849 = vpop.permute.xlu0 %848
        %850 = vrot.lane.b32.xlu0 %v569, 127
        %v851 = vpop.permute.xlu0 %850
        %852 = vrot.lane.b32.xlu0 %v575, 127
        %v853 = vpop.permute.xlu0 %852
        %854 = vrot.lane.b32.xlu0 %v581, 127
        %v855 = vpop.permute.xlu0 %854
        %vm856 = vcmp.lt.s32.totalorder %v427, 127
        %v857 = vsel %vm856, %v841, %v849
        %v858 = vsel %vm856, %v843, %v851
        %v859 = vsel %vm856, %v845, %v853
        %v860 = vsel %vm856, %v847, %v855
        %v861 = vsel %vm856, %v849, %v841
        %v862 = vsel %vm856, %v851, %v843
        %v863 = vsel %vm856, %v853, %v845
        %v864 = vsel %vm856, %v855, %v847
        %vm865 = vcmp.lt.s32.totalorder %v451, 127
        %vm866 = vcmp.lt.s32.totalorder %v452, 127
        %v867 = vsel %vm865, 1, 0
        %v868 = vsel %vm866, 1, 0
        %vm869 = vcmp.eq.s32.totalorder %v867, 1
        %vm870 = vcmp.eq.s32.totalorder %v868, 1
        %v871 = vsel %vm869, %v857, 0.0
        %v872 = vsel %vm870, %v861, 0.0
        %v873 = vsel %vm869, %v858, 0.0
        %v874 = vsel %vm870, %v862, 0.0
        %v875 = vsel %vm869, %v859, 0.0
        %v876 = vsel %vm870, %v863, 0.0
        %v877 = vsel %vm869, %v860, 0.0
        %v878 = vsel %vm870, %v864, 0.0
        %880 = vset.pattern.permute.xlu0 0
        %881 = vperm.xlu0 %880, %v797
        %v882 = vpop.permute.xlu0 %881
        %885 = vset.pattern.permute.xlu0 0
        %886 = vperm.xlu0 %885, %v798
        %v887 = vpop.permute.xlu0 %886
        %890 = vset.pattern.permute.xlu0 0
        %891 = vperm.xlu0 %890, %v799
        %v892 = vpop.permute.xlu0 %891
        %895 = vset.pattern.permute.xlu0 0
        %896 = vperm.xlu0 %895, %v800
        %v897 = vpop.permute.xlu0 %896
        %v900 = vsel %vm689, %v792, 0
        %v903 = vsel %vm689, %v793, 0
        %v906 = vsel %vm689, %v794, 0
        %v909 = vsel %vm689, %v795, 0
        %911 = vmatprep.subr.mxu0 %v833
        %912 = vmatpush1.msra.mxu0 %v832
        %913 = vmatprep.subr.mxu0 %v835
        %914 = vmatpush1.msra.mxu0 %v834
        %915 = vmatprep.subr.mxu0 %v837
        %916 = vmatpush1.msra.mxu0 %v836
        %917 = vmatprep.subr.mxu0 %v839
        %918 = vmatpush1.msra.mxu0 %v838
        %919 = vmatprep.subr.mxu0 %v563
        %920 = vmatpush1.msra.mxu0 %v561
        %921 = vmatprep.subr.mxu0 %v569
        %922 = vmatpush1.msra.mxu0 %v567
        %923 = vmatprep.subr.mxu0 %v575
        %924 = vmatpush1.msra.mxu0 %v573
        %925 = vmatprep.subr.mxu0 %v581
        %926 = vmatpush1.msra.mxu0 %v579
        %927 = vmatprep.subr.mxu0 %v872
        %928 = vmatpush1.msra.mxu0 %v871
        %929 = vmatprep.subr.mxu0 %v874
        %930 = vmatpush1.msra.mxu0 %v873
        %931 = vmatprep.subr.mxu0 %v876
        %932 = vmatpush1.msra.mxu0 %v875
        %933 = vmatprep.subr.mxu0 %v878
        %934 = vmatpush1.msra.mxu0 %v877
        %935 = vmatprep.subr.mxu0 0.0
        %936 = vmatpush1.msra.mxu0 0.0
        %937 = vmatprep.subr.mxu0 0.0
        %938 = vmatpush1.msra.mxu0 0.0
        %939 = vmatprep.subr.mxu0 0.0
        %940 = vmatpush1.msra.mxu0 0.0
        %941 = vmatprep.subr.mxu0 0.0
        %942 = vmatpush1.msra.mxu0 0.0
        %943 = vmatprep.subr.mxu0 0.0
        %944 = vmatpush1.msra.mxu0 0.0
        %945 = vmatprep.subr.mxu0 0.0
        %946 = vmatpush1.msra.mxu0 0.0
        %947 = vmatprep.subr.mxu0 0.0
        %948 = vmatpush1.msra.mxu0 0.0
        %949 = vmatprep.subr.mxu0 0.0
        %950 = vmatpush1.msra.mxu0 0.0
        %951 = vmatprep.subr.mxu0 0.0
        %952 = vmatpush1.msra.mxu0 0.0
        %953 = vmatprep.subr.mxu0 0.0
        %954 = vmatpush1.msra.mxu0 0.0
        %955 = vmatprep.subr.mxu0 0.0
        %956 = vmatpush1.msra.mxu0 0.0
        %957 = vmatprep.subr.mxu0 0.0
        %958 = vmatpush1.msra.mxu0 0.0
        %959 = vmatprep.subr.mxu0 0.0
        %960 = vmatpush1.msra.mxu0 0.0
        %961 = vmatprep.subr.mxu0 0.0
        %962 = vmatpush1.msra.mxu0 0.0
        %963 = vmatprep.subr.mxu0 0.0
        %964 = vmatpush1.msra.mxu0 0.0
        %965 = vmatprep.subr.mxu0 0.0
        %966 = vmatpush1.msra.mxu0 0.0
        %967 = vmatprep.subr.mxu0 0.0
        %968 = vmatpush1.msra.mxu0 0.0
        %969 = vmatprep.subr.mxu0 0.0
        %970 = vmatpush1.msra.mxu0 0.0
        %971 = vmatprep.subr.mxu0 0.0
        %972 = vmatpush1.msra.mxu0 0.0
        %973 = vmatprep.subr.mxu0 0.0
        %974 = vmatpush1.msra.mxu0 0.0
        %975 = vmatprep.mubr.f32.mxu0 0.0
        %976 = vmatmul.mubr.f32.gmra.mrb[0].mxu0 %v900
        %v977 = vpop.f32.mrb[0].mxu0
        %v978 = vadd.f32 %v882, %v977
        %v979 = vpop.f32.mrb[0].mxu0
        %v980 = vadd.f32 %v882, %v979
        %981 = vmatprep.mubr.f32.mxu0 0.0
        %982 = vmatmul.mubr.f32.gmra.mrb[0].mxu0 %v903
        %v983 = vpop.f32.mrb[0].mxu0
        %v984 = vadd.f32 %v887, %v983
        %v985 = vpop.f32.mrb[0].mxu0
        %v986 = vadd.f32 %v887, %v985
        %987 = vmatprep.mubr.f32.mxu0 0.0
        %988 = vmatmul.mubr.f32.gmra.mrb[0].mxu0 %v906
        %v989 = vpop.f32.mrb[0].mxu0
        %v990 = vadd.f32 %v892, %v989
        %v991 = vpop.f32.mrb[0].mxu0
        %v992 = vadd.f32 %v892, %v991
        %993 = vmatprep.mubr.f32.mxu0 0.0
        %994 = vmatmul.mubr.f32.gmra.mrb[0].mxu0 %v909
        %v995 = vpop.f32.mrb[0].mxu0
        %v996 = vadd.f32 %v897, %v995
        %v997 = vpop.f32.mrb[0].mxu0
        %v998 = vadd.f32 %v897, %v997
        %999 = vdwg.mxu0
        %v1000 = vld [vmem:[#allocation10] sm:$0xff]
        %v1001 = vld [vmem:[#allocation10 + $0x8] sm:$0xff]
        %v1002 = vld [vmem:[#allocation10 + $0x10] sm:$0xff]
        %v1003 = vld [vmem:[#allocation10 + $0x18] sm:$0xff]
        %s1004 = scalar_lea.vmem [#allocation11], 64
        %v1005 = vld [vmem:[%s1004] sm:$0xff]
        %v1006 = vld [vmem:[%s1004 + $0x8] sm:$0xff]
        %v1007 = vld [vmem:[%s1004 + $0x10] sm:$0xff]
        %v1008 = vld [vmem:[%s1004 + $0x18] sm:$0xff]
        %1010 = vset.pattern.permute.xlu0 0
        %1011 = vperm.xlu0 %1010, %v1005
        %v1012 = vpop.permute.xlu0 %1011
        %1015 = vset.pattern.permute.xlu0 0
        %1016 = vperm.xlu0 %1015, %v1006
        %v1017 = vpop.permute.xlu0 %1016
        %1020 = vset.pattern.permute.xlu0 0
        %1021 = vperm.xlu0 %1020, %v1007
        %v1022 = vpop.permute.xlu0 %1021
        %1025 = vset.pattern.permute.xlu0 0
        %1026 = vperm.xlu0 %1025, %v1008
        %v1027 = vpop.permute.xlu0 %1026
        %vm1029 = vcmask 523264
        %v1031 = vsel %vm1029, %v1000, 0
        %v1034 = vsel %vm1029, %v1001, 0
        %v1037 = vsel %vm1029, %v1002, 0
        %v1040 = vsel %vm1029, %v1003, 0
        %1042 = vmatprep.subr.mxu0 %v771
        %1043 = vmatpush1.msra.mxu0 %v769
        %1044 = vmatprep.subr.mxu0 %v777
        %1045 = vmatpush1.msra.mxu0 %v775
        %1046 = vmatprep.subr.mxu0 %v783
        %1047 = vmatpush1.msra.mxu0 %v781
        %1048 = vmatprep.subr.mxu0 %v789
        %1049 = vmatpush1.msra.mxu0 %v787
        %1050 = vmatprep.subr.mxu0 %v980
        %1051 = vmatpush1.msra.mxu0 %v978
        %1052 = vmatprep.subr.mxu0 %v986
        %1053 = vmatpush1.msra.mxu0 %v984
        %1054 = vmatprep.subr.mxu0 %v992
        %1055 = vmatpush1.msra.mxu0 %v990
        %1056 = vmatprep.subr.mxu0 %v998
        %1057 = vmatpush1.msra.mxu0 %v996
        %1058 = vmatprep.subr.mxu0 0.0
        %1059 = vmatpush1.msra.mxu0 0.0
        %1060 = vmatprep.subr.mxu0 0.0
        %1061 = vmatpush1.msra.mxu0 0.0
        %1062 = vmatprep.subr.mxu0 0.0
        %1063 = vmatpush1.msra.mxu0 0.0
        %1064 = vmatprep.subr.mxu0 0.0
        %1065 = vmatpush1.msra.mxu0 0.0
        %1066 = vmatprep.subr.mxu0 0.0
        %1067 = vmatpush1.msra.mxu0 0.0
        %1068 = vmatprep.subr.mxu0 0.0
        %1069 = vmatpush1.msra.mxu0 0.0
        %1070 = vmatprep.subr.mxu0 0.0
        %1071 = vmatpush1.msra.mxu0 0.0
        %1072 = vmatprep.subr.mxu0 0.0
        %1073 = vmatpush1.msra.mxu0 0.0
        %1074 = vmatprep.subr.mxu0 0.0
        %1075 = vmatpush1.msra.mxu0 0.0
        %1076 = vmatprep.subr.mxu0 0.0
        %1077 = vmatpush1.msra.mxu0 0.0
        %1078 = vmatprep.subr.mxu0 0.0
        %1079 = vmatpush1.msra.mxu0 0.0
        %1080 = vmatprep.subr.mxu0 0.0
        %1081 = vmatpush1.msra.mxu0 0.0
        %1082 = vmatprep.subr.mxu0 0.0
        %1083 = vmatpush1.msra.mxu0 0.0
        %1084 = vmatprep.subr.mxu0 0.0
        %1085 = vmatpush1.msra.mxu0 0.0
        %1086 = vmatprep.subr.mxu0 0.0
        %1087 = vmatpush1.msra.mxu0 0.0
        %1088 = vmatprep.subr.mxu0 0.0
        %1089 = vmatpush1.msra.mxu0 0.0
        %1090 = vmatprep.subr.mxu0 0.0
        %1091 = vmatpush1.msra.mxu0 0.0
        %1092 = vmatprep.subr.mxu0 0.0
        %1093 = vmatpush1.msra.mxu0 0.0
        %1094 = vmatprep.subr.mxu0 0.0
        %1095 = vmatpush1.msra.mxu0 0.0
        %1096 = vmatprep.subr.mxu0 0.0
        %1097 = vmatpush1.msra.mxu0 0.0
        %1098 = vmatprep.subr.mxu0 0.0
        %1099 = vmatpush1.msra.mxu0 0.0
        %1100 = vmatprep.subr.mxu0 0.0
        %1101 = vmatpush1.msra.mxu0 0.0
        %1102 = vmatprep.subr.mxu0 0.0
        %1103 = vmatpush1.msra.mxu0 0.0
        %1104 = vmatprep.subr.mxu0 0.0
        %1105 = vmatpush1.msra.mxu0 0.0
        %1106 = vmatprep.mubr.f32.mxu0 0.0
        %1107 = vmatmul.mubr.f32.gmra.mrb[0].mxu0 %v1031
        %v1108 = vpop.f32.mrb[0].mxu0
        %v1109 = vadd.f32 %v1012, %v1108
        %v1110 = vpop.f32.mrb[0].mxu0
        %v1111 = vadd.f32 %v1012, %v1110
        %1112 = vmatprep.mubr.f32.mxu0 0.0
        %1113 = vmatmul.mubr.f32.gmra.mrb[0].mxu0 %v1034
        %v1114 = vpop.f32.mrb[0].mxu0
        %v1115 = vadd.f32 %v1017, %v1114
        %v1116 = vpop.f32.mrb[0].mxu0
        %v1117 = vadd.f32 %v1017, %v1116
        %1118 = vmatprep.mubr.f32.mxu0 0.0
        %1119 = vmatmul.mubr.f32.gmra.mrb[0].mxu0 %v1037
        %v1120 = vpop.f32.mrb[0].mxu0
        %v1121 = vadd.f32 %v1022, %v1120
        %v1122 = vpop.f32.mrb[0].mxu0
        %v1123 = vadd.f32 %v1022, %v1122
        %1124 = vmatprep.mubr.f32.mxu0 0.0
        %1125 = vmatmul.mubr.f32.gmra.mrb[0].mxu0 %v1040
        %v1126 = vpop.f32.mrb[0].mxu0
        %v1127 = vadd.f32 %v1027, %v1126
        %v1128 = vpop.f32.mrb[0].mxu0
        %v1129 = vadd.f32 %v1027, %v1128
        %1130 = vdwg.mxu0
        %v1131 = vmax.f32 %v1109, 0.0
        %v1132 = vmax.f32 %v1111, 0.0
        %v1133 = vmax.f32 %v1115, 0.0
        %v1134 = vmax.f32 %v1117, 0.0
        %v1135 = vmax.f32 %v1121, 0.0
        %v1136 = vmax.f32 %v1123, 0.0
        %v1137 = vmax.f32 %v1127, 0.0
        %v1138 = vmax.f32 %v1129, 0.0
        %v1139 = vadd.f32 %v1131, %v561
        %v1140 = vadd.f32 %v1132, %v563
        %v1141 = vadd.f32 %v1133, %v567
        %v1142 = vadd.f32 %v1134, %v569
        %v1143 = vadd.f32 %v1135, %v573
        %v1144 = vadd.f32 %v1136, %v575
        %v1145 = vadd.f32 %v1137, %v579
        %v1146 = vadd.f32 %v1138, %v581
        %s1147 = scalar_lea.vmem [#allocation8], 64
        %v1148 = vld [vmem:[%s1147] sm:$0xff]
        %v1149 = vld [vmem:[%s1147 + $0x8] sm:$0xff]
        %v1150 = vld [vmem:[%s1147 + $0x10] sm:$0xff]
        %v1151 = vld [vmem:[%s1147 + $0x18] sm:$0xff]
        %s1152 = scalar_lea.vmem [#allocation11], 96
        %v1153 = vld [vmem:[%s1152] sm:$0xff]
        %v1154 = vld [vmem:[%s1152 + $0x8] sm:$0xff]
        %v1155 = vld [vmem:[%s1152 + $0x10] sm:$0xff]
        %v1156 = vld [vmem:[%s1152 + $0x18] sm:$0xff]
        %1157 = vrot.lane.b32.xlu0 %v1139, 2
        %v1158 = vpop.permute.xlu0 %1157
        %1159 = vrot.lane.b32.xlu0 %v1141, 2
        %v1160 = vpop.permute.xlu0 %1159
        %1161 = vrot.lane.b32.xlu0 %v1143, 2
        %v1162 = vpop.permute.xlu0 %1161
        %1163 = vrot.lane.b32.xlu0 %v1145, 2
        %v1164 = vpop.permute.xlu0 %1163
        %1165 = vrot.lane.b32.xlu0 %v1140, 2
        %v1166 = vpop.permute.xlu0 %1165
        %1167 = vrot.lane.b32.xlu0 %v1142, 2
        %v1168 = vpop.permute.xlu0 %1167
        %1169 = vrot.lane.b32.xlu0 %v1144, 2
        %v1170 = vpop.permute.xlu0 %1169
        %1171 = vrot.lane.b32.xlu0 %v1146, 2
        %v1172 = vpop.permute.xlu0 %1171
        %vm1173 = vcmp.lt.s32.totalorder %v427, 2
        %v1174 = vsel %vm1173, %v1158, %v1166
        %v1175 = vsel %vm1173, %v1160, %v1168
        %v1176 = vsel %vm1173, %v1162, %v1170
        %v1177 = vsel %vm1173, %v1164, %v1172
        %v1178 = vsel %vm1173, %v1166, %v1158
        %v1179 = vsel %vm1173, %v1168, %v1160
        %v1180 = vsel %vm1173, %v1170, %v1162
        %v1181 = vsel %vm1173, %v1172, %v1164
        %vm1182 = vcmp.ge.s32.totalorder %v451, 2
        %vm1183 = vcmp.ge.s32.totalorder %v452, 2
        %v1184 = vsel %vm1182, 1, 0
        %v1185 = vsel %vm1183, 1, 0
        %vm1186 = vcmp.eq.s32.totalorder %v1184, 1
        %vm1187 = vcmp.eq.s32.totalorder %v1185, 1
        %v1188 = vsel %vm1186, %v1178, 0.0
        %v1189 = vsel %vm1187, %v1174, 0.0
        %v1190 = vsel %vm1186, %v1179, 0.0
        %v1191 = vsel %vm1187, %v1175, 0.0
        %v1192 = vsel %vm1186, %v1180, 0.0
        %v1193 = vsel %vm1187, %v1176, 0.0
        %v1194 = vsel %vm1186, %v1181, 0.0
        %v1195 = vsel %vm1187, %v1177, 0.0
        %1196 = vrot.lane.b32.xlu0 %v1139, 126
        %v1197 = vpop.permute.xlu0 %1196
        %1198 = vrot.lane.b32.xlu0 %v1141, 126
        %v1199 = vpop.permute.xlu0 %1198
        %1200 = vrot.lane.b32.xlu0 %v1143, 126
        %v1201 = vpop.permute.xlu0 %1200
        %1202 = vrot.lane.b32.xlu0 %v1145, 126
        %v1203 = vpop.permute.xlu0 %1202
        %1204 = vrot.lane.b32.xlu0 %v1140, 126
        %v1205 = vpop.permute.xlu0 %1204
        %1206 = vrot.lane.b32.xlu0 %v1142, 126
        %v1207 = vpop.permute.xlu0 %1206
        %1208 = vrot.lane.b32.xlu0 %v1144, 126
        %v1209 = vpop.permute.xlu0 %1208
        %1210 = vrot.lane.b32.xlu0 %v1146, 126
        %v1211 = vpop.permute.xlu0 %1210
        %vm1212 = vcmp.lt.s32.totalorder %v427, 126
        %v1213 = vsel %vm1212, %v1197, %v1205
        %v1214 = vsel %vm1212, %v1199, %v1207
        %v1215 = vsel %vm1212, %v1201, %v1209
        %v1216 = vsel %vm1212, %v1203, %v1211
        %v1217 = vsel %vm1212, %v1205, %v1197
        %v1218 = vsel %vm1212, %v1207, %v1199
        %v1219 = vsel %vm1212, %v1209, %v1201
        %v1220 = vsel %vm1212, %v1211, %v1203
        %vm1221 = vcmp.lt.s32.totalorder %v451, 126
        %vm1222 = vcmp.lt.s32.totalorder %v452, 126
        %v1223 = vsel %vm1221, 1, 0
        %v1224 = vsel %vm1222, 1, 0
        %vm1225 = vcmp.eq.s32.totalorder %v1223, 1
        %vm1226 = vcmp.eq.s32.totalorder %v1224, 1
        %v1227 = vsel %vm1225, %v1213, 0.0
        %v1228 = vsel %vm1226, %v1217, 0.0
        %v1229 = vsel %vm1225, %v1214, 0.0
        %v1230 = vsel %vm1226, %v1218, 0.0
        %v1231 = vsel %vm1225, %v1215, 0.0
        %v1232 = vsel %vm1226, %v1219, 0.0
        %v1233 = vsel %vm1225, %v1216, 0.0
        %v1234 = vsel %vm1226, %v1220, 0.0
        %1236 = vset.pattern.permute.xlu0 0
        %1237 = vperm.xlu0 %1236, %v1153
        %v1238 = vpop.permute.xlu0 %1237
        %1241 = vset.pattern.permute.xlu0 0
        %1242 = vperm.xlu0 %1241, %v1154
        %v1243 = vpop.permute.xlu0 %1242
        %1246 = vset.pattern.permute.xlu0 0
        %1247 = vperm.xlu0 %1246, %v1155
        %v1248 = vpop.permute.xlu0 %1247
        %1251 = vset.pattern.permute.xlu0 0
        %1252 = vperm.xlu0 %1251, %v1156
        %v1253 = vpop.permute.xlu0 %1252
        %v1256 = vsel %vm689, %v1148, 0
        %v1259 = vsel %vm689, %v1149, 0
        %v1262 = vsel %vm689, %v1150, 0
        %v1265 = vsel %vm689, %v1151, 0
        %1267 = vmatprep.subr.mxu0 %v1189
        %1268 = vmatpush1.msra.mxu0 %v1188
        %1269 = vmatprep.subr.mxu0 %v1191
        %1270 = vmatpush1.msra.mxu0 %v1190
        %1271 = vmatprep.subr.mxu0 %v1193
        %1272 = vmatpush1.msra.mxu0 %v1192
        %1273 = vmatprep.subr.mxu0 %v1195
        %1274 = vmatpush1.msra.mxu0 %v1194
        %1275 = vmatprep.subr.mxu0 %v1140
        %1276 = vmatpush1.msra.mxu0 %v1139
        %1277 = vmatprep.subr.mxu0 %v1142
        %1278 = vmatpush1.msra.mxu0 %v1141
        %1279 = vmatprep.subr.mxu0 %v1144
        %1280 = vmatpush1.msra.mxu0 %v1143
        %1281 = vmatprep.subr.mxu0 %v1146
        %1282 = vmatpush1.msra.mxu0 %v1145
        %1283 = vmatprep.subr.mxu0 %v1228
        %1284 = vmatpush1.msra.mxu0 %v1227
        %1285 = vmatprep.subr.mxu0 %v1230
        %1286 = vmatpush1.msra.mxu0 %v1229
        %1287 = vmatprep.subr.mxu0 %v1232
        %1288 = vmatpush1.msra.mxu0 %v1231
        %1289 = vmatprep.subr.mxu0 %v1234
        %1290 = vmatpush1.msra.mxu0 %v1233
        %1291 = vmatprep.subr.mxu0 0.0
        %1292 = vmatpush1.msra.mxu0 0.0
        %1293 = vmatprep.subr.mxu0 0.0
        %1294 = vmatpush1.msra.mxu0 0.0
        %1295 = vmatprep.subr.mxu0 0.0
        %1296 = vmatpush1.msra.mxu0 0.0
        %1297 = vmatprep.subr.mxu0 0.0
        %1298 = vmatpush1.msra.mxu0 0.0
        %1299 = vmatprep.subr.mxu0 0.0
        %1300 = vmatpush1.msra.mxu0 0.0
        %1301 = vmatprep.subr.mxu0 0.0
        %1302 = vmatpush1.msra.mxu0 0.0
        %1303 = vmatprep.subr.mxu0 0.0
        %1304 = vmatpush1.msra.mxu0 0.0
        %1305 = vmatprep.subr.mxu0 0.0
        %1306 = vmatpush1.msra.mxu0 0.0
        %1307 = vmatprep.subr.mxu0 0.0
        %1308 = vmatpush1.msra.mxu0 0.0
        %1309 = vmatprep.subr.mxu0 0.0
        %1310 = vmatpush1.msra.mxu0 0.0
        %1311 = vmatprep.subr.mxu0 0.0
        %1312 = vmatpush1.msra.mxu0 0.0
        %1313 = vmatprep.subr.mxu0 0.0
        %1314 = vmatpush1.msra.mxu0 0.0
        %1315 = vmatprep.subr.mxu0 0.0
        %1316 = vmatpush1.msra.mxu0 0.0
        %1317 = vmatprep.subr.mxu0 0.0
        %1318 = vmatpush1.msra.mxu0 0.0
        %1319 = vmatprep.subr.mxu0 0.0
        %1320 = vmatpush1.msra.mxu0 0.0
        %1321 = vmatprep.subr.mxu0 0.0
        %1322 = vmatpush1.msra.mxu0 0.0
        %1323 = vmatprep.subr.mxu0 0.0
        %1324 = vmatpush1.msra.mxu0 0.0
        %1325 = vmatprep.subr.mxu0 0.0
        %1326 = vmatpush1.msra.mxu0 0.0
        %1327 = vmatprep.subr.mxu0 0.0
        %1328 = vmatpush1.msra.mxu0 0.0
        %1329 = vmatprep.subr.mxu0 0.0
        %1330 = vmatpush1.msra.mxu0 0.0
        %1331 = vmatprep.mubr.f32.mxu0 0.0
        %1332 = vmatmul.mubr.f32.gmra.mrb[0].mxu0 %v1256
        %v1333 = vpop.f32.mrb[0].mxu0
        %v1334 = vadd.f32 %v1238, %v1333
        %v1335 = vpop.f32.mrb[0].mxu0
        %v1336 = vadd.f32 %v1238, %v1335
        %1337 = vmatprep.mubr.f32.mxu0 0.0
        %1338 = vmatmul.mubr.f32.gmra.mrb[0].mxu0 %v1259
        %v1339 = vpop.f32.mrb[0].mxu0
        %v1340 = vadd.f32 %v1243, %v1339
        %v1341 = vpop.f32.mrb[0].mxu0
        %v1342 = vadd.f32 %v1243, %v1341
        %1343 = vmatprep.mubr.f32.mxu0 0.0
        %1344 = vmatmul.mubr.f32.gmra.mrb[0].mxu0 %v1262
        %v1345 = vpop.f32.mrb[0].mxu0
        %v1346 = vadd.f32 %v1248, %v1345
        %v1347 = vpop.f32.mrb[0].mxu0
        %v1348 = vadd.f32 %v1248, %v1347
        %1349 = vmatprep.mubr.f32.mxu0 0.0
        %1350 = vmatmul.mubr.f32.gmra.mrb[0].mxu0 %v1265
        %v1351 = vpop.f32.mrb[0].mxu0
        %v1352 = vadd.f32 %v1253, %v1351
        %v1353 = vpop.f32.mrb[0].mxu0
        %v1354 = vadd.f32 %v1253, %v1353
        %1355 = vdwg.mxu0
        %s1356 = scalar_lea.vmem [#allocation8], 96
        %v1357 = vld [vmem:[%s1356] sm:$0xff]
        %v1358 = vld [vmem:[%s1356 + $0x8] sm:$0xff]
        %v1359 = vld [vmem:[%s1356 + $0x10] sm:$0xff]
        %v1360 = vld [vmem:[%s1356 + $0x18] sm:$0xff]
        %s1361 = scalar_lea.vmem [#allocation11], 128
        %v1362 = vld [vmem:[%s1361] sm:$0xff]
        %v1363 = vld [vmem:[%s1361 + $0x8] sm:$0xff]
        %v1364 = vld [vmem:[%s1361 + $0x10] sm:$0xff]
        %v1365 = vld [vmem:[%s1361 + $0x18] sm:$0xff]
        %1367 = vset.pattern.permute.xlu0 0
        %1368 = vperm.xlu0 %1367, %v1362
        %v1369 = vpop.permute.xlu0 %1368
        %1372 = vset.pattern.permute.xlu0 0
        %1373 = vperm.xlu0 %1372, %v1363
        %v1374 = vpop.permute.xlu0 %1373
        %1377 = vset.pattern.permute.xlu0 0
        %1378 = vperm.xlu0 %1377, %v1364
        %v1379 = vpop.permute.xlu0 %1378
        %1382 = vset.pattern.permute.xlu0 0
        %1383 = vperm.xlu0 %1382, %v1365
        %v1384 = vpop.permute.xlu0 %1383
        %v1387 = vsel %vm689, %v1357, 0
        %v1390 = vsel %vm689, %v1358, 0
        %v1393 = vsel %vm689, %v1359, 0
        %v1396 = vsel %vm689, %v1360, 0
        %1398 = vmatprep.subr.mxu0 %v1189
        %1399 = vmatpush1.msra.mxu0 %v1188
        %1400 = vmatprep.subr.mxu0 %v1191
        %1401 = vmatpush1.msra.mxu0 %v1190
        %1402 = vmatprep.subr.mxu0 %v1193
        %1403 = vmatpush1.msra.mxu0 %v1192
        %1404 = vmatprep.subr.mxu0 %v1195
        %1405 = vmatpush1.msra.mxu0 %v1194
        %1406 = vmatprep.subr.mxu0 %v1140
        %1407 = vmatpush1.msra.mxu0 %v1139
        %1408 = vmatprep.subr.mxu0 %v1142
        %1409 = vmatpush1.msra.mxu0 %v1141
        %1410 = vmatprep.subr.mxu0 %v1144
        %1411 = vmatpush1.msra.mxu0 %v1143
        %1412 = vmatprep.subr.mxu0 %v1146
        %1413 = vmatpush1.msra.mxu0 %v1145
        %1414 = vmatprep.subr.mxu0 %v1228
        %1415 = vmatpush1.msra.mxu0 %v1227
        %1416 = vmatprep.subr.mxu0 %v1230
        %1417 = vmatpush1.msra.mxu0 %v1229
        %1418 = vmatprep.subr.mxu0 %v1232
        %1419 = vmatpush1.msra.mxu0 %v1231
        %1420 = vmatprep.subr.mxu0 %v1234
        %1421 = vmatpush1.msra.mxu0 %v1233
        %1422 = vmatprep.subr.mxu0 0.0
        %1423 = vmatpush1.msra.mxu0 0.0
        %1424 = vmatprep.subr.mxu0 0.0
        %1425 = vmatpush1.msra.mxu0 0.0
        %1426 = vmatprep.subr.mxu0 0.0
        %1427 = vmatpush1.msra.mxu0 0.0
        %1428 = vmatprep.subr.mxu0 0.0
        %1429 = vmatpush1.msra.mxu0 0.0
        %1430 = vmatprep.subr.mxu0 0.0
        %1431 = vmatpush1.msra.mxu0 0.0
        %1432 = vmatprep.subr.mxu0 0.0
        %1433 = vmatpush1.msra.mxu0 0.0
        %1434 = vmatprep.subr.mxu0 0.0
        %1435 = vmatpush1.msra.mxu0 0.0
        %1436 = vmatprep.subr.mxu0 0.0
        %1437 = vmatpush1.msra.mxu0 0.0
        %1438 = vmatprep.subr.mxu0 0.0
        %1439 = vmatpush1.msra.mxu0 0.0
        %1440 = vmatprep.subr.mxu0 0.0
        %1441 = vmatpush1.msra.mxu0 0.0
        %1442 = vmatprep.subr.mxu0 0.0
        %1443 = vmatpush1.msra.mxu0 0.0
        %1444 = vmatprep.subr.mxu0 0.0
        %1445 = vmatpush1.msra.mxu0 0.0
        %1446 = vmatprep.subr.mxu0 0.0
        %1447 = vmatpush1.msra.mxu0 0.0
        %1448 = vmatprep.subr.mxu0 0.0
        %1449 = vmatpush1.msra.mxu0 0.0
        %1450 = vmatprep.subr.mxu0 0.0
        %1451 = vmatpush1.msra.mxu0 0.0
        %1452 = vmatprep.subr.mxu0 0.0
        %1453 = vmatpush1.msra.mxu0 0.0
        %1454 = vmatprep.subr.mxu0 0.0
        %1455 = vmatpush1.msra.mxu0 0.0
        %1456 = vmatprep.subr.mxu0 0.0
        %1457 = vmatpush1.msra.mxu0 0.0
        %1458 = vmatprep.subr.mxu0 0.0
        %1459 = vmatpush1.msra.mxu0 0.0
        %1460 = vmatprep.subr.mxu0 0.0
        %1461 = vmatpush1.msra.mxu0 0.0
        %1462 = vmatprep.mubr.f32.mxu0 0.0
        %1463 = vmatmul.mubr.f32.gmra.mrb[0].mxu0 %v1387
        %v1464 = vpop.f32.mrb[0].mxu0
        %v1465 = vadd.f32 %v1369, %v1464
        %v1466 = vpop.f32.mrb[0].mxu0
        %v1467 = vadd.f32 %v1369, %v1466
        %1468 = vmatprep.mubr.f32.mxu0 0.0
        %1469 = vmatmul.mubr.f32.gmra.mrb[0].mxu0 %v1390
        %v1470 = vpop.f32.mrb[0].mxu0
        %v1471 = vadd.f32 %v1374, %v1470
        %v1472 = vpop.f32.mrb[0].mxu0
        %v1473 = vadd.f32 %v1374, %v1472
        %1474 = vmatprep.mubr.f32.mxu0 0.0
        %1475 = vmatmul.mubr.f32.gmra.mrb[0].mxu0 %v1393
        %v1476 = vpop.f32.mrb[0].mxu0
        %v1477 = vadd.f32 %v1379, %v1476
        %v1478 = vpop.f32.mrb[0].mxu0
        %v1479 = vadd.f32 %v1379, %v1478
        %1480 = vmatprep.mubr.f32.mxu0 0.0
        %1481 = vmatmul.mubr.f32.gmra.mrb[0].mxu0 %v1396
        %v1482 = vpop.f32.mrb[0].mxu0
        %v1483 = vadd.f32 %v1384, %v1482
        %v1484 = vpop.f32.mrb[0].mxu0
        %v1485 = vadd.f32 %v1384, %v1484
        %1486 = vdwg.mxu0
        %s1487 = scalar_lea.vmem [#allocation10], 32
        %v1488 = vld [vmem:[%s1487] sm:$0xff]
        %v1489 = vld [vmem:[%s1487 + $0x8] sm:$0xff]
        %v1490 = vld [vmem:[%s1487 + $0x10] sm:$0xff]
        %v1491 = vld [vmem:[%s1487 + $0x18] sm:$0xff]
        %s1492 = scalar_lea.vmem [#allocation11], 160
        %v1493 = vld [vmem:[%s1492] sm:$0xff]
        %v1494 = vld [vmem:[%s1492 + $0x8] sm:$0xff]
        %v1495 = vld [vmem:[%s1492 + $0x10] sm:$0xff]
        %v1496 = vld [vmem:[%s1492 + $0x18] sm:$0xff]
        %1498 = vset.pattern.permute.xlu0 0
        %1499 = vperm.xlu0 %1498, %v1493
        %v1500 = vpop.permute.xlu0 %1499
        %1503 = vset.pattern.permute.xlu0 0
        %1504 = vperm.xlu0 %1503, %v1494
        %v1505 = vpop.permute.xlu0 %1504
        %1508 = vset.pattern.permute.xlu0 0
        %1509 = vperm.xlu0 %1508, %v1495
        %v1510 = vpop.permute.xlu0 %1509
        %1513 = vset.pattern.permute.xlu0 0
        %1514 = vperm.xlu0 %1513, %v1496
        %v1515 = vpop.permute.xlu0 %1514
        %v1518 = vsel %vm1029, %v1488, 0
        %v1521 = vsel %vm1029, %v1489, 0
        %v1524 = vsel %vm1029, %v1490, 0
        %v1527 = vsel %vm1029, %v1491, 0
        %1529 = vmatprep.subr.mxu0 %v1336
        %1530 = vmatpush1.msra.mxu0 %v1334
        %1531 = vmatprep.subr.mxu0 %v1342
        %1532 = vmatpush1.msra.mxu0 %v1340
        %1533 = vmatprep.subr.mxu0 %v1348
        %1534 = vmatpush1.msra.mxu0 %v1346
        %1535 = vmatprep.subr.mxu0 %v1354
        %1536 = vmatpush1.msra.mxu0 %v1352
        %1537 = vmatprep.subr.mxu0 %v1467
        %1538 = vmatpush1.msra.mxu0 %v1465
        %1539 = vmatprep.subr.mxu0 %v1473
        %1540 = vmatpush1.msra.mxu0 %v1471
        %1541 = vmatprep.subr.mxu0 %v1479
        %1542 = vmatpush1.msra.mxu0 %v1477
        %1543 = vmatprep.subr.mxu0 %v1485
        %1544 = vmatpush1.msra.mxu0 %v1483
        %1545 = vmatprep.subr.mxu0 0.0
        %1546 = vmatpush1.msra.mxu0 0.0
        %1547 = vmatprep.subr.mxu0 0.0
        %1548 = vmatpush1.msra.mxu0 0.0
        %1549 = vmatprep.subr.mxu0 0.0
        %1550 = vmatpush1.msra.mxu0 0.0
        %1551 = vmatprep.subr.mxu0 0.0
        %1552 = vmatpush1.msra.mxu0 0.0
        %1553 = vmatprep.subr.mxu0 0.0
        %1554 = vmatpush1.msra.mxu0 0.0
        %1555 = vmatprep.subr.mxu0 0.0
        %1556 = vmatpush1.msra.mxu0 0.0
        %1557 = vmatprep.subr.mxu0 0.0
        %1558 = vmatpush1.msra.mxu0 0.0
        %1559 = vmatprep.subr.mxu0 0.0
        %1560 = vmatpush1.msra.mxu0 0.0
        %1561 = vmatprep.subr.mxu0 0.0
        %1562 = vmatpush1.msra.mxu0 0.0
        %1563 = vmatprep.subr.mxu0 0.0
        %1564 = vmatpush1.msra.mxu0 0.0
        %1565 = vmatprep.subr.mxu0 0.0
        %1566 = vmatpush1.msra.mxu0 0.0
        %1567 = vmatprep.subr.mxu0 0.0
        %1568 = vmatpush1.msra.mxu0 0.0
        %1569 = vmatprep.subr.mxu0 0.0
        %1570 = vmatpush1.msra.mxu0 0.0
        %1571 = vmatprep.subr.mxu0 0.0
        %1572 = vmatpush1.msra.mxu0 0.0
        %1573 = vmatprep.subr.mxu0 0.0
        %1574 = vmatpush1.msra.mxu0 0.0
        %1575 = vmatprep.subr.mxu0 0.0
        %1576 = vmatpush1.msra.mxu0 0.0
        %1577 = vmatprep.subr.mxu0 0.0
        %1578 = vmatpush1.msra.mxu0 0.0
        %1579 = vmatprep.subr.mxu0 0.0
        %1580 = vmatpush1.msra.mxu0 0.0
        %1581 = vmatprep.subr.mxu0 0.0
        %1582 = vmatpush1.msra.mxu0 0.0
        %1583 = vmatprep.subr.mxu0 0.0
        %1584 = vmatpush1.msra.mxu0 0.0
        %1585 = vmatprep.subr.mxu0 0.0
        %1586 = vmatpush1.msra.mxu0 0.0
        %1587 = vmatprep.subr.mxu0 0.0
        %1588 = vmatpush1.msra.mxu0 0.0
        %1589 = vmatprep.subr.mxu0 0.0
        %1590 = vmatpush1.msra.mxu0 0.0
        %1591 = vmatprep.subr.mxu0 0.0
        %1592 = vmatpush1.msra.mxu0 0.0
        %1593 = vmatprep.mubr.f32.mxu0 0.0
        %1594 = vmatmul.mubr.f32.gmra.mrb[0].mxu0 %v1518
        %v1595 = vpop.f32.mrb[0].mxu0
        %v1596 = vadd.f32 %v1500, %v1595
        %v1597 = vpop.f32.mrb[0].mxu0
        %v1598 = vadd.f32 %v1500, %v1597
        %1599 = vmatprep.mubr.f32.mxu0 0.0
        %1600 = vmatmul.mubr.f32.gmra.mrb[0].mxu0 %v1521
        %v1601 = vpop.f32.mrb[0].mxu0
        %v1602 = vadd.f32 %v1505, %v1601
        %v1603 = vpop.f32.mrb[0].mxu0
        %v1604 = vadd.f32 %v1505, %v1603
        %1605 = vmatprep.mubr.f32.mxu0 0.0
        %1606 = vmatmul.mubr.f32.gmra.mrb[0].mxu0 %v1524
        %v1607 = vpop.f32.mrb[0].mxu0
        %v1608 = vadd.f32 %v1510, %v1607
        %v1609 = vpop.f32.mrb[0].mxu0
        %v1610 = vadd.f32 %v1510, %v1609
        %1611 = vmatprep.mubr.f32.mxu0 0.0
        %1612 = vmatmul.mubr.f32.gmra.mrb[0].mxu0 %v1527
        %v1613 = vpop.f32.mrb[0].mxu0
        %v1614 = vadd.f32 %v1515, %v1613
        %v1615 = vpop.f32.mrb[0].mxu0
        %v1616 = vadd.f32 %v1515, %v1615
        %1617 = vdwg.mxu0
        %v1618 = vmax.f32 %v1596, 0.0
        %v1619 = vmax.f32 %v1598, 0.0
        %v1620 = vmax.f32 %v1602, 0.0
        %v1621 = vmax.f32 %v1604, 0.0
        %v1622 = vmax.f32 %v1608, 0.0
        %v1623 = vmax.f32 %v1610, 0.0
        %v1624 = vmax.f32 %v1614, 0.0
        %v1625 = vmax.f32 %v1616, 0.0
        %v1626 = vadd.f32 %v1618, %v1139
        %v1627 = vadd.f32 %v1619, %v1140
        %v1628 = vadd.f32 %v1620, %v1141
        %v1629 = vadd.f32 %v1621, %v1142
        %v1630 = vadd.f32 %v1622, %v1143
        %v1631 = vadd.f32 %v1623, %v1144
        %v1632 = vadd.f32 %v1624, %v1145
        %v1633 = vadd.f32 %v1625, %v1146
        %s1634 = scalar_lea.vmem [#allocation8], 128
        %v1635 = vld [vmem:[%s1634] sm:$0xff]
        %v1636 = vld [vmem:[%s1634 + $0x8] sm:$0xff]
        %v1637 = vld [vmem:[%s1634 + $0x10] sm:$0xff]
        %v1638 = vld [vmem:[%s1634 + $0x18] sm:$0xff]
        %s1639 = scalar_lea.vmem [#allocation11], 192
        %v1640 = vld [vmem:[%s1639] sm:$0xff]
        %v1641 = vld [vmem:[%s1639 + $0x8] sm:$0xff]
        %v1642 = vld [vmem:[%s1639 + $0x10] sm:$0xff]
        %v1643 = vld [vmem:[%s1639 + $0x18] sm:$0xff]
        %1644 = vrot.lane.b32.xlu0 %v1626, 1
        %v1645 = vpop.permute.xlu0 %1644
        %1646 = vrot.lane.b32.xlu0 %v1628, 1
        %v1647 = vpop.permute.xlu0 %1646
        %1648 = vrot.lane.b32.xlu0 %v1630, 1
        %v1649 = vpop.permute.xlu0 %1648
        %1650 = vrot.lane.b32.xlu0 %v1632, 1
        %v1651 = vpop.permute.xlu0 %1650
        %1652 = vrot.lane.b32.xlu0 %v1627, 1
        %v1653 = vpop.permute.xlu0 %1652
        %1654 = vrot.lane.b32.xlu0 %v1629, 1
        %v1655 = vpop.permute.xlu0 %1654
        %1656 = vrot.lane.b32.xlu0 %v1631, 1
        %v1657 = vpop.permute.xlu0 %1656
        %1658 = vrot.lane.b32.xlu0 %v1633, 1
        %v1659 = vpop.permute.xlu0 %1658
        %v1660 = vsel %vm817, %v1645, %v1653
        %v1661 = vsel %vm817, %v1647, %v1655
        %v1662 = vsel %vm817, %v1649, %v1657
        %v1663 = vsel %vm817, %v1651, %v1659
        %v1664 = vsel %vm817, %v1653, %v1645
        %v1665 = vsel %vm817, %v1655, %v1647
        %v1666 = vsel %vm817, %v1657, %v1649
        %v1667 = vsel %vm817, %v1659, %v1651
        %v1668 = vsel %vm830, %v1664, 0.0
        %v1669 = vsel %vm831, %v1660, 0.0
        %v1670 = vsel %vm830, %v1665, 0.0
        %v1671 = vsel %vm831, %v1661, 0.0
        %v1672 = vsel %vm830, %v1666, 0.0
        %v1673 = vsel %vm831, %v1662, 0.0
        %v1674 = vsel %vm830, %v1667, 0.0
        %v1675 = vsel %vm831, %v1663, 0.0
        %1676 = vrot.lane.b32.xlu0 %v1626, 127
        %v1677 = vpop.permute.xlu0 %1676
        %1678 = vrot.lane.b32.xlu0 %v1628, 127
        %v1679 = vpop.permute.xlu0 %1678
        %1680 = vrot.lane.b32.xlu0 %v1630, 127
        %v1681 = vpop.permute.xlu0 %1680
        %1682 = vrot.lane.b32.xlu0 %v1632, 127
        %v1683 = vpop.permute.xlu0 %1682
        %1684 = vrot.lane.b32.xlu0 %v1627, 127
        %v1685 = vpop.permute.xlu0 %1684
        %1686 = vrot.lane.b32.xlu0 %v1629, 127
        %v1687 = vpop.permute.xlu0 %1686
        %1688 = vrot.lane.b32.xlu0 %v1631, 127
        %v1689 = vpop.permute.xlu0 %1688
        %1690 = vrot.lane.b32.xlu0 %v1633, 127
        %v1691 = vpop.permute.xlu0 %1690
        %v1692 = vsel %vm856, %v1677, %v1685
        %v1693 = vsel %vm856, %v1679, %v1687
        %v1694 = vsel %vm856, %v1681, %v1689
        %v1695 = vsel %vm856, %v1683, %v1691
        %v1696 = vsel %vm856, %v1685, %v1677
        %v1697 = vsel %vm856, %v1687, %v1679
        %v1698 = vsel %vm856, %v1689, %v1681
        %v1699 = vsel %vm856, %v1691, %v1683
        %v1700 = vsel %vm869, %v1692, 0.0
        %v1701 = vsel %vm870, %v1696, 0.0
        %v1702 = vsel %vm869, %v1693, 0.0
        %v1703 = vsel %vm870, %v1697, 0.0
        %v1704 = vsel %vm869, %v1694, 0.0
        %v1705 = vsel %vm870, %v1698, 0.0
        %v1706 = vsel %vm869, %v1695, 0.0
        %v1707 = vsel %vm870, %v1699, 0.0
        %1709 = vset.pattern.permute.xlu0 0
        %1710 = vperm.xlu0 %1709, %v1640
        %v1711 = vpop.permute.xlu0 %1710
        %1714 = vset.pattern.permute.xlu0 0
        %1715 = vperm.xlu0 %1714, %v1641
        %v1716 = vpop.permute.xlu0 %1715
        %1719 = vset.pattern.permute.xlu0 0
        %1720 = vperm.xlu0 %1719, %v1642
        %v1721 = vpop.permute.xlu0 %1720
        %1724 = vset.pattern.permute.xlu0 0
        %1725 = vperm.xlu0 %1724, %v1643
        %v1726 = vpop.permute.xlu0 %1725
        %v1729 = vsel %vm689, %v1635, 0
        %v1732 = vsel %vm689, %v1636, 0
        %v1735 = vsel %vm689, %v1637, 0
        %v1738 = vsel %vm689, %v1638, 0
        %1740 = vmatprep.subr.mxu0 %v1669
        %1741 = vmatpush1.msra.mxu0 %v1668
        %1742 = vmatprep.subr.mxu0 %v1671
        %1743 = vmatpush1.msra.mxu0 %v1670
        %1744 = vmatprep.subr.mxu0 %v1673
        %1745 = vmatpush1.msra.mxu0 %v1672
        %1746 = vmatprep.subr.mxu0 %v1675
        %1747 = vmatpush1.msra.mxu0 %v1674
        %1748 = vmatprep.subr.mxu0 %v1627
        %1749 = vmatpush1.msra.mxu0 %v1626
        %1750 = vmatprep.subr.mxu0 %v1629
        %1751 = vmatpush1.msra.mxu0 %v1628
        %1752 = vmatprep.subr.mxu0 %v1631
        %1753 = vmatpush1.msra.mxu0 %v1630
        %1754 = vmatprep.subr.mxu0 %v1633
        %1755 = vmatpush1.msra.mxu0 %v1632
        %1756 = vmatprep.subr.mxu0 %v1701
        %1757 = vmatpush1.msra.mxu0 %v1700
        %1758 = vmatprep.subr.mxu0 %v1703
        %1759 = vmatpush1.msra.mxu0 %v1702
        %1760 = vmatprep.subr.mxu0 %v1705
        %1761 = vmatpush1.msra.mxu0 %v1704
        %1762 = vmatprep.subr.mxu0 %v1707
        %1763 = vmatpush1.msra.mxu0 %v1706
        %1764 = vmatprep.subr.mxu0 0.0
        %1765 = vmatpush1.msra.mxu0 0.0
        %1766 = vmatprep.subr.mxu0 0.0
        %1767 = vmatpush1.msra.mxu0 0.0
        %1768 = vmatprep.subr.mxu0 0.0
        %1769 = vmatpush1.msra.mxu0 0.0
        %1770 = vmatprep.subr.mxu0 0.0
        %1771 = vmatpush1.msra.mxu0 0.0
        %1772 = vmatprep.subr.mxu0 0.0
        %1773 = vmatpush1.msra.mxu0 0.0
        %1774 = vmatprep.subr.mxu0 0.0
        %1775 = vmatpush1.msra.mxu0 0.0
        %1776 = vmatprep.subr.mxu0 0.0
        %1777 = vmatpush1.msra.mxu0 0.0
        %1778 = vmatprep.subr.mxu0 0.0
        %1779 = vmatpush1.msra.mxu0 0.0
        %1780 = vmatprep.subr.mxu0 0.0
        %1781 = vmatpush1.msra.mxu0 0.0
        %1782 = vmatprep.subr.mxu0 0.0
        %1783 = vmatpush1.msra.mxu0 0.0
        %1784 = vmatprep.subr.mxu0 0.0
        %1785 = vmatpush1.msra.mxu0 0.0
        %1786 = vmatprep.subr.mxu0 0.0
        %1787 = vmatpush1.msra.mxu0 0.0
        %1788 = vmatprep.subr.mxu0 0.0
        %1789 = vmatpush1.msra.mxu0 0.0
        %1790 = vmatprep.subr.mxu0 0.0
        %1791 = vmatpush1.msra.mxu0 0.0
        %1792 = vmatprep.subr.mxu0 0.0
        %1793 = vmatpush1.msra.mxu0 0.0
        %1794 = vmatprep.subr.mxu0 0.0
        %1795 = vmatpush1.msra.mxu0 0.0
        %1796 = vmatprep.subr.mxu0 0.0
        %1797 = vmatpush1.msra.mxu0 0.0
        %1798 = vmatprep.subr.mxu0 0.0
        %1799 = vmatpush1.msra.mxu0 0.0
        %1800 = vmatprep.subr.mxu0 0.0
        %1801 = vmatpush1.msra.mxu0 0.0
        %1802 = vmatprep.subr.mxu0 0.0
        %1803 = vmatpush1.msra.mxu0 0.0
        %1804 = vmatprep.mubr.f32.mxu0 0.0
        %1805 = vmatmul.mubr.f32.gmra.mrb[0].mxu0 %v1729
        %v1806 = vpop.f32.mrb[0].mxu0
        %v1807 = vadd.f32 %v1711, %v1806
        %v1808 = vpop.f32.mrb[0].mxu0
        %v1809 = vadd.f32 %v1711, %v1808
        %1810 = vmatprep.mubr.f32.mxu0 0.0
        %1811 = vmatmul.mubr.f32.gmra.mrb[0].mxu0 %v1732
        %v1812 = vpop.f32.mrb[0].mxu0
        %v1813 = vadd.f32 %v1716, %v1812
        %v1814 = vpop.f32.mrb[0].mxu0
        %v1815 = vadd.f32 %v1716, %v1814
        %1816 = vmatprep.mubr.f32.mxu0 0.0
        %1817 = vmatmul.mubr.f32.gmra.mrb[0].mxu0 %v1735
        %v1818 = vpop.f32.mrb[0].mxu0
        %v1819 = vadd.f32 %v1721, %v1818
        %v1820 = vpop.f32.mrb[0].mxu0
        %v1821 = vadd.f32 %v1721, %v1820
        %1822 = vmatprep.mubr.f32.mxu0 0.0
        %1823 = vmatmul.mubr.f32.gmra.mrb[0].mxu0 %v1738
        %v1824 = vpop.f32.mrb[0].mxu0
        %v1825 = vadd.f32 %v1726, %v1824
        %v1826 = vpop.f32.mrb[0].mxu0
        %v1827 = vadd.f32 %v1726, %v1826
        %1828 = vdwg.mxu0
        %s1829 = scalar_lea.vmem [#allocation8], 160
        %v1830 = vld [vmem:[%s1829] sm:$0xff]
        %v1831 = vld [vmem:[%s1829 + $0x8] sm:$0xff]
        %v1832 = vld [vmem:[%s1829 + $0x10] sm:$0xff]
        %v1833 = vld [vmem:[%s1829 + $0x18] sm:$0xff]
        %s1834 = scalar_lea.vmem [#allocation11], 224
        %v1835 = vld [vmem:[%s1834] sm:$0xff]
        %v1836 = vld [vmem:[%s1834 + $0x8] sm:$0xff]
        %v1837 = vld [vmem:[%s1834 + $0x10] sm:$0xff]
        %v1838 = vld [vmem:[%s1834 + $0x18] sm:$0xff]
        %1839 = vrot.lane.b32.xlu0 %v1626, 4
        %v1840 = vpop.permute.xlu0 %1839
        %1841 = vrot.lane.b32.xlu0 %v1628, 4
        %v1842 = vpop.permute.xlu0 %1841
        %1843 = vrot.lane.b32.xlu0 %v1630, 4
        %v1844 = vpop.permute.xlu0 %1843
        %1845 = vrot.lane.b32.xlu0 %v1632, 4
        %v1846 = vpop.permute.xlu0 %1845
        %1847 = vrot.lane.b32.xlu0 %v1627, 4
        %v1848 = vpop.permute.xlu0 %1847
        %1849 = vrot.lane.b32.xlu0 %v1629, 4
        %v1850 = vpop.permute.xlu0 %1849
        %1851 = vrot.lane.b32.xlu0 %v1631, 4
        %v1852 = vpop.permute.xlu0 %1851
        %1853 = vrot.lane.b32.xlu0 %v1633, 4
        %v1854 = vpop.permute.xlu0 %1853
        %v1855 = vsel %vm607, %v1840, %v1848
        %v1856 = vsel %vm607, %v1842, %v1850
        %v1857 = vsel %vm607, %v1844, %v1852
        %v1858 = vsel %vm607, %v1846, %v1854
        %v1859 = vsel %vm607, %v1848, %v1840
        %v1860 = vsel %vm607, %v1850, %v1842
        %v1861 = vsel %vm607, %v1852, %v1844
        %v1862 = vsel %vm607, %v1854, %v1846
        %v1863 = vsel %vm620, %v1859, 0.0
        %v1864 = vsel %vm621, %v1855, 0.0
        %v1865 = vsel %vm620, %v1860, 0.0
        %v1866 = vsel %vm621, %v1856, 0.0
        %v1867 = vsel %vm620, %v1861, 0.0
        %v1868 = vsel %vm621, %v1857, 0.0
        %v1869 = vsel %vm620, %v1862, 0.0
        %v1870 = vsel %vm621, %v1858, 0.0
        %1871 = vrot.lane.b32.xlu0 %v1626, 124
        %v1872 = vpop.permute.xlu0 %1871
        %1873 = vrot.lane.b32.xlu0 %v1628, 124
        %v1874 = vpop.permute.xlu0 %1873
        %1875 = vrot.lane.b32.xlu0 %v1630, 124
        %v1876 = vpop.permute.xlu0 %1875
        %1877 = vrot.lane.b32.xlu0 %v1632, 124
        %v1878 = vpop.permute.xlu0 %1877
        %1879 = vrot.lane.b32.xlu0 %v1627, 124
        %v1880 = vpop.permute.xlu0 %1879
        %1881 = vrot.lane.b32.xlu0 %v1629, 124
        %v1882 = vpop.permute.xlu0 %1881
        %1883 = vrot.lane.b32.xlu0 %v1631, 124
        %v1884 = vpop.permute.xlu0 %1883
        %1885 = vrot.lane.b32.xlu0 %v1633, 124
        %v1886 = vpop.permute.xlu0 %1885
        %v1887 = vsel %vm646, %v1872, %v1880
        %v1888 = vsel %vm646, %v1874, %v1882
        %v1889 = vsel %vm646, %v1876, %v1884
        %v1890 = vsel %vm646, %v1878, %v1886
        %v1891 = vsel %vm646, %v1880, %v1872
        %v1892 = vsel %vm646, %v1882, %v1874
        %v1893 = vsel %vm646, %v1884, %v1876
        %v1894 = vsel %vm646, %v1886, %v1878
        %v1895 = vsel %vm659, %v1887, 0.0
        %v1896 = vsel %vm660, %v1891, 0.0
        %v1897 = vsel %vm659, %v1888, 0.0
        %v1898 = vsel %vm660, %v1892, 0.0
        %v1899 = vsel %vm659, %v1889, 0.0
        %v1900 = vsel %vm660, %v1893, 0.0
        %v1901 = vsel %vm659, %v1890, 0.0
        %v1902 = vsel %vm660, %v1894, 0.0
        %1904 = vset.pattern.permute.xlu0 0
        %1905 = vperm.xlu0 %1904, %v1835
        %v1906 = vpop.permute.xlu0 %1905
        %1909 = vset.pattern.permute.xlu0 0
        %1910 = vperm.xlu0 %1909, %v1836
        %v1911 = vpop.permute.xlu0 %1910
        %1914 = vset.pattern.permute.xlu0 0
        %1915 = vperm.xlu0 %1914, %v1837
        %v1916 = vpop.permute.xlu0 %1915
        %1919 = vset.pattern.permute.xlu0 0
        %1920 = vperm.xlu0 %1919, %v1838
        %v1921 = vpop.permute.xlu0 %1920
        %v1924 = vsel %vm689, %v1830, 0
        %v1927 = vsel %vm689, %v1831, 0
        %v1930 = vsel %vm689, %v1832, 0
        %v1933 = vsel %vm689, %v1833, 0
        %1935 = vmatprep.subr.mxu0 %v1864
        %1936 = vmatpush1.msra.mxu0 %v1863
        %1937 = vmatprep.subr.mxu0 %v1866
        %1938 = vmatpush1.msra.mxu0 %v1865
        %1939 = vmatprep.subr.mxu0 %v1868
        %1940 = vmatpush1.msra.mxu0 %v1867
        %1941 = vmatprep.subr.mxu0 %v1870
        %1942 = vmatpush1.msra.mxu0 %v1869
        %1943 = vmatprep.subr.mxu0 %v1627
        %1944 = vmatpush1.msra.mxu0 %v1626
        %1945 = vmatprep.subr.mxu0 %v1629
        %1946 = vmatpush1.msra.mxu0 %v1628
        %1947 = vmatprep.subr.mxu0 %v1631
        %1948 = vmatpush1.msra.mxu0 %v1630
        %1949 = vmatprep.subr.mxu0 %v1633
        %1950 = vmatpush1.msra.mxu0 %v1632
        %1951 = vmatprep.subr.mxu0 %v1896
        %1952 = vmatpush1.msra.mxu0 %v1895
        %1953 = vmatprep.subr.mxu0 %v1898
        %1954 = vmatpush1.msra.mxu0 %v1897
        %1955 = vmatprep.subr.mxu0 %v1900
        %1956 = vmatpush1.msra.mxu0 %v1899
        %1957 = vmatprep.subr.mxu0 %v1902
        %1958 = vmatpush1.msra.mxu0 %v1901
        %1959 = vmatprep.subr.mxu0 0.0
        %1960 = vmatpush1.msra.mxu0 0.0
        %1961 = vmatprep.subr.mxu0 0.0
        %1962 = vmatpush1.msra.mxu0 0.0
        %1963 = vmatprep.subr.mxu0 0.0
        %1964 = vmatpush1.msra.mxu0 0.0
        %1965 = vmatprep.subr.mxu0 0.0
        %1966 = vmatpush1.msra.mxu0 0.0
        %1967 = vmatprep.subr.mxu0 0.0
        %1968 = vmatpush1.msra.mxu0 0.0
        %1969 = vmatprep.subr.mxu0 0.0
        %1970 = vmatpush1.msra.mxu0 0.0
        %1971 = vmatprep.subr.mxu0 0.0
        %1972 = vmatpush1.msra.mxu0 0.0
        %1973 = vmatprep.subr.mxu0 0.0
        %1974 = vmatpush1.msra.mxu0 0.0
        %1975 = vmatprep.subr.mxu0 0.0
        %1976 = vmatpush1.msra.mxu0 0.0
        %1977 = vmatprep.subr.mxu0 0.0
        %1978 = vmatpush1.msra.mxu0 0.0
        %1979 = vmatprep.subr.mxu0 0.0
        %1980 = vmatpush1.msra.mxu0 0.0
        %1981 = vmatprep.subr.mxu0 0.0
        %1982 = vmatpush1.msra.mxu0 0.0
        %1983 = vmatprep.subr.mxu0 0.0
        %1984 = vmatpush1.msra.mxu0 0.0
        %1985 = vmatprep.subr.mxu0 0.0
        %1986 = vmatpush1.msra.mxu0 0.0
        %1987 = vmatprep.subr.mxu0 0.0
        %1988 = vmatpush1.msra.mxu0 0.0
        %1989 = vmatprep.subr.mxu0 0.0
        %1990 = vmatpush1.msra.mxu0 0.0
        %1991 = vmatprep.subr.mxu0 0.0
        %1992 = vmatpush1.msra.mxu0 0.0
        %1993 = vmatprep.subr.mxu0 0.0
        %1994 = vmatpush1.msra.mxu0 0.0
        %1995 = vmatprep.subr.mxu0 0.0
        %1996 = vmatpush1.msra.mxu0 0.0
        %1997 = vmatprep.subr.mxu0 0.0
        %1998 = vmatpush1.msra.mxu0 0.0
        %1999 = vmatprep.mubr.f32.mxu0 0.0
        %2000 = vmatmul.mubr.f32.gmra.mrb[0].mxu0 %v1924
        %v2001 = vpop.f32.mrb[0].mxu0
        %v2002 = vadd.f32 %v1906, %v2001
        %v2003 = vpop.f32.mrb[0].mxu0
        %v2004 = vadd.f32 %v1906, %v2003
        %2005 = vmatprep.mubr.f32.mxu0 0.0
        %2006 = vmatmul.mubr.f32.gmra.mrb[0].mxu0 %v1927
        %v2007 = vpop.f32.mrb[0].mxu0
        %v2008 = vadd.f32 %v1911, %v2007
        %v2009 = vpop.f32.mrb[0].mxu0
        %v2010 = vadd.f32 %v1911, %v2009
        %2011 = vmatprep.mubr.f32.mxu0 0.0
        %2012 = vmatmul.mubr.f32.gmra.mrb[0].mxu0 %v1930
        %v2013 = vpop.f32.mrb[0].mxu0
        %v2014 = vadd.f32 %v1916, %v2013
        %v2015 = vpop.f32.mrb[0].mxu0
        %v2016 = vadd.f32 %v1916, %v2015
        %2017 = vmatprep.mubr.f32.mxu0 0.0
        %2018 = vmatmul.mubr.f32.gmra.mrb[0].mxu0 %v1933
        %v2019 = vpop.f32.mrb[0].mxu0
        %v2020 = vadd.f32 %v1921, %v2019
        %v2021 = vpop.f32.mrb[0].mxu0
        %v2022 = vadd.f32 %v1921, %v2021
        %2023 = vdwg.mxu0
        %s2024 = scalar_lea.vmem [#allocation10], 64
        %v2025 = vld [vmem:[%s2024] sm:$0xff]
        %v2026 = vld [vmem:[%s2024 + $0x8] sm:$0xff]
        %v2027 = vld [vmem:[%s2024 + $0x10] sm:$0xff]
        %v2028 = vld [vmem:[%s2024 + $0x18] sm:$0xff]
        %s2029 = scalar_lea.vmem [#allocation11], 256
        %v2030 = vld [vmem:[%s2029] sm:$0xff]
        %v2031 = vld [vmem:[%s2029 + $0x8] sm:$0xff]
        %v2032 = vld [vmem:[%s2029 + $0x10] sm:$0xff]
        %v2033 = vld [vmem:[%s2029 + $0x18] sm:$0xff]
        %2035 = vset.pattern.permute.xlu0 0
        %2036 = vperm.xlu0 %2035, %v2030
        %v2037 = vpop.permute.xlu0 %2036
        %2040 = vset.pattern.permute.xlu0 0
        %2041 = vperm.xlu0 %2040, %v2031
        %v2042 = vpop.permute.xlu0 %2041
        %2045 = vset.pattern.permute.xlu0 0
        %2046 = vperm.xlu0 %2045, %v2032
        %v2047 = vpop.permute.xlu0 %2046
        %2050 = vset.pattern.permute.xlu0 0
        %2051 = vperm.xlu0 %2050, %v2033
        %v2052 = vpop.permute.xlu0 %2051
        %v2055 = vsel %vm1029, %v2025, 0
        %v2058 = vsel %vm1029, %v2026, 0
        %v2061 = vsel %vm1029, %v2027, 0
        %v2064 = vsel %vm1029, %v2028, 0
        %2066 = vmatprep.subr.mxu0 %v1809
        %2067 = vmatpush1.msra.mxu0 %v1807
        %2068 = vmatprep.subr.mxu0 %v1815
        %2069 = vmatpush1.msra.mxu0 %v1813
        %2070 = vmatprep.subr.mxu0 %v1821
        %2071 = vmatpush1.msra.mxu0 %v1819
        %2072 = vmatprep.subr.mxu0 %v1827
        %2073 = vmatpush1.msra.mxu0 %v1825
        %2074 = vmatprep.subr.mxu0 %v2004
        %2075 = vmatpush1.msra.mxu0 %v2002
        %2076 = vmatprep.subr.mxu0 %v2010
        %2077 = vmatpush1.msra.mxu0 %v2008
        %2078 = vmatprep.subr.mxu0 %v2016
        %2079 = vmatpush1.msra.mxu0 %v2014
        %2080 = vmatprep.subr.mxu0 %v2022
        %2081 = vmatpush1.msra.mxu0 %v2020
        %2082 = vmatprep.subr.mxu0 0.0
        %2083 = vmatpush1.msra.mxu0 0.0
        %2084 = vmatprep.subr.mxu0 0.0
        %2085 = vmatpush1.msra.mxu0 0.0
        %2086 = vmatprep.subr.mxu0 0.0
        %2087 = vmatpush1.msra.mxu0 0.0
        %2088 = vmatprep.subr.mxu0 0.0
        %2089 = vmatpush1.msra.mxu0 0.0
        %2090 = vmatprep.subr.mxu0 0.0
        %2091 = vmatpush1.msra.mxu0 0.0
        %2092 = vmatprep.subr.mxu0 0.0
        %2093 = vmatpush1.msra.mxu0 0.0
        %2094 = vmatprep.subr.mxu0 0.0
        %2095 = vmatpush1.msra.mxu0 0.0
        %2096 = vmatprep.subr.mxu0 0.0
        %2097 = vmatpush1.msra.mxu0 0.0
        %2098 = vmatprep.subr.mxu0 0.0
        %2099 = vmatpush1.msra.mxu0 0.0
        %2100 = vmatprep.subr.mxu0 0.0
        %2101 = vmatpush1.msra.mxu0 0.0
        %2102 = vmatprep.subr.mxu0 0.0
        %2103 = vmatpush1.msra.mxu0 0.0
        %2104 = vmatprep.subr.mxu0 0.0
        %2105 = vmatpush1.msra.mxu0 0.0
        %2106 = vmatprep.subr.mxu0 0.0
        %2107 = vmatpush1.msra.mxu0 0.0
        %2108 = vmatprep.subr.mxu0 0.0
        %2109 = vmatpush1.msra.mxu0 0.0
        %2110 = vmatprep.subr.mxu0 0.0
        %2111 = vmatpush1.msra.mxu0 0.0
        %2112 = vmatprep.subr.mxu0 0.0
        %2113 = vmatpush1.msra.mxu0 0.0
        %2114 = vmatprep.subr.mxu0 0.0
        %2115 = vmatpush1.msra.mxu0 0.0
        %2116 = vmatprep.subr.mxu0 0.0
        %2117 = vmatpush1.msra.mxu0 0.0
        %2118 = vmatprep.subr.mxu0 0.0
        %2119 = vmatpush1.msra.mxu0 0.0
        %2120 = vmatprep.subr.mxu0 0.0
        %2121 = vmatpush1.msra.mxu0 0.0
        %2122 = vmatprep.subr.mxu0 0.0
        %2123 = vmatpush1.msra.mxu0 0.0
        %2124 = vmatprep.subr.mxu0 0.0
        %2125 = vmatpush1.msra.mxu0 0.0
        %2126 = vmatprep.subr.mxu0 0.0
        %2127 = vmatpush1.msra.mxu0 0.0
        %2128 = vmatprep.subr.mxu0 0.0
        %2129 = vmatpush1.msra.mxu0 0.0
        %2130 = vmatprep.mubr.f32.mxu0 0.0
        %2131 = vmatmul.mubr.f32.gmra.mrb[0].mxu0 %v2055
        %v2132 = vpop.f32.mrb[0].mxu0
        %v2133 = vadd.f32 %v2037, %v2132
        %v2134 = vpop.f32.mrb[0].mxu0
        %v2135 = vadd.f32 %v2037, %v2134
        %2136 = vmatprep.mubr.f32.mxu0 0.0
        %2137 = vmatmul.mubr.f32.gmra.mrb[0].mxu0 %v2058
        %v2138 = vpop.f32.mrb[0].mxu0
        %v2139 = vadd.f32 %v2042, %v2138
        %v2140 = vpop.f32.mrb[0].mxu0
        %v2141 = vadd.f32 %v2042, %v2140
        %2142 = vmatprep.mubr.f32.mxu0 0.0
        %2143 = vmatmul.mubr.f32.gmra.mrb[0].mxu0 %v2061
        %v2144 = vpop.f32.mrb[0].mxu0
        %v2145 = vadd.f32 %v2047, %v2144
        %v2146 = vpop.f32.mrb[0].mxu0
        %v2147 = vadd.f32 %v2047, %v2146
        %2148 = vmatprep.mubr.f32.mxu0 0.0
        %2149 = vmatmul.mubr.f32.gmra.mrb[0].mxu0 %v2064
        %v2150 = vpop.f32.mrb[0].mxu0
        %v2151 = vadd.f32 %v2052, %v2150
        %v2152 = vpop.f32.mrb[0].mxu0
        %v2153 = vadd.f32 %v2052, %v2152
        %2154 = vdwg.mxu0
        %v2155 = vmax.f32 %v2133, 0.0
        %v2156 = vmax.f32 %v2135, 0.0
        %v2157 = vmax.f32 %v2139, 0.0
        %v2158 = vmax.f32 %v2141, 0.0
        %v2159 = vmax.f32 %v2145, 0.0
        %v2160 = vmax.f32 %v2147, 0.0
        %v2161 = vmax.f32 %v2151, 0.0
        %v2162 = vmax.f32 %v2153, 0.0
        %v2163 = vadd.f32 %v2155, %v1626
        %v2164 = vadd.f32 %v2156, %v1627
        %v2165 = vadd.f32 %v2157, %v1628
        %v2166 = vadd.f32 %v2158, %v1629
        %v2167 = vadd.f32 %v2159, %v1630
        %v2168 = vadd.f32 %v2160, %v1631
        %v2169 = vadd.f32 %v2161, %v1632
        %v2170 = vadd.f32 %v2162, %v1633
        %v2171 = vld [vmem:[#allocation13] sm:$0xff]
        %v2172 = vld [vmem:[#allocation14] sm:$0xff]
        %2174 = vset.pattern.permute.xlu0 0
        %2175 = vperm.xlu0 %2174, %v2172
        %v2176 = vpop.permute.xlu0 %2175
        %vm2178 = vcmask 261120
        %v2180 = vsel %vm2178, %v2171, 0
        %2182 = vmatprep.subr.mxu0 %v2164
        %2183 = vmatpush1.msra.mxu0 %v2163
        %2184 = vmatprep.subr.mxu0 %v2166
        %2185 = vmatpush1.msra.mxu0 %v2165
        %2186 = vmatprep.subr.mxu0 %v2168
        %2187 = vmatpush1.msra.mxu0 %v2167
        %2188 = vmatprep.subr.mxu0 %v2170
        %2189 = vmatpush1.msra.mxu0 %v2169
        %2190 = vmatprep.subr.mxu0 0.0
        %2191 = vmatpush1.msra.mxu0 0.0
        %2192 = vmatprep.subr.mxu0 0.0
        %2193 = vmatpush1.msra.mxu0 0.0
        %2194 = vmatprep.subr.mxu0 0.0
        %2195 = vmatpush1.msra.mxu0 0.0
        %2196 = vmatprep.subr.mxu0 0.0
        %2197 = vmatpush1.msra.mxu0 0.0
        %2198 = vmatprep.subr.mxu0 0.0
        %2199 = vmatpush1.msra.mxu0 0.0
        %2200 = vmatprep.subr.mxu0 0.0
        %2201 = vmatpush1.msra.mxu0 0.0
        %2202 = vmatprep.subr.mxu0 0.0
        %2203 = vmatpush1.msra.mxu0 0.0
        %2204 = vmatprep.subr.mxu0 0.0
        %2205 = vmatpush1.msra.mxu0 0.0
        %2206 = vmatprep.subr.mxu0 0.0
        %2207 = vmatpush1.msra.mxu0 0.0
        %2208 = vmatprep.subr.mxu0 0.0
        %2209 = vmatpush1.msra.mxu0 0.0
        %2210 = vmatprep.subr.mxu0 0.0
        %2211 = vmatpush1.msra.mxu0 0.0
        %2212 = vmatprep.subr.mxu0 0.0
        %2213 = vmatpush1.msra.mxu0 0.0
        %2214 = vmatprep.subr.mxu0 0.0
        %2215 = vmatpush1.msra.mxu0 0.0
        %2216 = vmatprep.subr.mxu0 0.0
        %2217 = vmatpush1.msra.mxu0 0.0
        %2218 = vmatprep.subr.mxu0 0.0
        %2219 = vmatpush1.msra.mxu0 0.0
        %2220 = vmatprep.subr.mxu0 0.0
        %2221 = vmatpush1.msra.mxu0 0.0
        %2222 = vmatprep.subr.mxu0 0.0
        %2223 = vmatpush1.msra.mxu0 0.0
        %2224 = vmatprep.subr.mxu0 0.0
        %2225 = vmatpush1.msra.mxu0 0.0
        %2226 = vmatprep.subr.mxu0 0.0
        %2227 = vmatpush1.msra.mxu0 0.0
        %2228 = vmatprep.subr.mxu0 0.0
        %2229 = vmatpush1.msra.mxu0 0.0
        %2230 = vmatprep.subr.mxu0 0.0
        %2231 = vmatpush1.msra.mxu0 0.0
        %2232 = vmatprep.subr.mxu0 0.0
        %2233 = vmatpush1.msra.mxu0 0.0
        %2234 = vmatprep.subr.mxu0 0.0
        %2235 = vmatpush1.msra.mxu0 0.0
        %2236 = vmatprep.subr.mxu0 0.0
        %2237 = vmatpush1.msra.mxu0 0.0
        %2238 = vmatprep.subr.mxu0 0.0
        %2239 = vmatpush1.msra.mxu0 0.0
        %2240 = vmatprep.subr.mxu0 0.0
        %2241 = vmatpush1.msra.mxu0 0.0
        %2242 = vmatprep.subr.mxu0 0.0
        %2243 = vmatpush1.msra.mxu0 0.0
        %2244 = vmatprep.subr.mxu0 0.0
        %2245 = vmatpush1.msra.mxu0 0.0
        %2246 = vmatprep.mubr.f32.mxu0 0.0
        %2247 = vmatmul.mubr.f32.gmra.mrb[0].mxu0 %v2180
        %v2248 = vpop.f32.mrb[0].mxu0
        %v2249 = vadd.f32 %v2176, %v2248
        %v2250 = vpop.f32.mrb[0].mxu0
        %v2251 = vadd.f32 %v2176, %v2250
        %2252 = vdwg.mxu0
        %2253 = vst [vmem:[%s421] sm:$0xff] %v2249
        %2254 = vst [vmem:[%s421 + $0x8] sm:$0xff] %v2251
        %s2255 = sand.u32 %s210, 1
        %s2256 = scalar_lea.sflag [#allocation4], %s2255
        %s2257 = sand.u32 %s210, 1
        %s2258 = smul.addr %s2257, 16
        %s2259 = scalar_lea.vmem [#allocation16], %s2258
        // Predicated region
        $region85: #{tpu_custom_call.1} parent=51 // pred_check
          %p2260 = pneg %p220
        $region86: #{tpu_custom_call.1} parent=51 // pred_check_branch
          %2262 = sbr.rel (%p2260) target = $region88
        $region87: #{tpu_custom_call.1} parent=51 // pred_region
          %s2264 = ssub.s32 256, 256
          %2265 = vsyncadd %s2256, %s2264
          %s2266 = smul.addr %s29, 2
          %s2267 = smul.addr %s2266, 128
          %s2268 = scalar_lea.hbm %s8, %s2267
          %s2270 = sshll.u32 %s2259, 4
          %s2271 = int_to_ptr.vmem [resolvable:$true] %s2270
          %2273 = dma.vmem_to_hbm [thread:$0]  %s2271, 256, %s2268, %s2256
        $region88: #{tpu_custom_call.1} parent=51 // pred_fallthru
          _
      $region52: #{tpu_custom_call.1} parent=5 // pred_fallthru
        _
      %p2274 = scmp.le.s32.totalorder 2, %s24
      // Predicated region
      $region89: #{tpu_custom_call.1} parent=5 // pred_check
        %p2275 = pneg %p2274
      $region90: #{tpu_custom_call.1} parent=5 // pred_check_branch
        %2277 = sbr.rel (%p2275) target = $region92
      $region91: #{tpu_custom_call.1} parent=5 // pred_region
        %s2278 = ssub.s32 %s24, 2
        // Predicated region
        $region93: #{tpu_custom_call.1} parent=91 // pred_check
          %p2279 = pneg %p226
        $region94: #{tpu_custom_call.1} parent=91 // pred_check_branch
          %2281 = sbr.rel (%p2279) target = $region96
        $region95: #{tpu_custom_call.1} parent=91 // pred_region
          %s2282 = sand.u32 %s211, 1
          %s2283 = scalar_lea.sflag [#allocation4], %s2282
          %s2284 = sand.u32 %s211, 1
          %s2285 = smul.addr %s2284, 16
          %s2286 = scalar_lea.vmem [#allocation16], %s2285
          %2287 = dma.done %s2283, 256
        $region96: #{tpu_custom_call.1} parent=91 // pred_fallthru
          _
      $region92: #{tpu_custom_call.1} parent=5 // pred_fallthru
        _
    $region6: #{tpu_custom_call.1} parent=1 // loop_footer
      %s28 = sadd.s32 1, %s24
    $region7: #{tpu_custom_call.1} parent=1 // loop_footer_branch
      %23 = sbr.rel target = $region3
    $region8: #{tpu_custom_call.1} parent=1 // loop_exit
      _
    %2288 = vsyncpa [#allocation3], 1
    %s2289 = scalar_lea.sflag [#allocation3], 1
    %2290 = vsyncpa %s2289, 1
    %2291 = vsyncpa [#allocation6], 1
    %2292 = vsyncpa [#allocation9], 1
    %2293 = vsyncpa [#allocation12], 1
    %2294 = vsyncpa [#allocation15], 1
    %2295 = vsyncpa [#allocation4], 1
    %s2296 = scalar_lea.sflag [#allocation4], 1
    %2297 = vsyncpa %s2296, 1

</llo_original>
